<compile_context>
chip_gen: v7x
topology: tpu7x:2x2x1
jax: 0.10.0
libtpu: 0.0.40
codegen_flags: <defaults>
</compile_context>

<pallas_src>
import functools

import numpy as np
import jax
import jax.numpy as jnp
from jax import lax
from jax.experimental import pallas as pl
from jax.experimental.pallas import tpu as pltpu

LANE = 128
SUBLANE = 8


def _round_up(a, b):
    return -(-a // b) * b


def _vmem_budget():
    """(vmem_limit_bytes, block-sizing budget) — generation aware, consistent."""
    try:
        vmem_cap = int(pltpu.get_tpu_info().vmem_capacity_bytes)
    except Exception:
        vmem_cap = 64 * 1024 * 1024          # conservative: v7x per-TC VMEM
    vmem_limit = int(min(vmem_cap // 2, 48 * 1024 * 1024))   # 32 MiB v7x, 48 MiB v5e/v6e
    block_budget = (vmem_limit * 3) // 4     # headroom for acc / compiler temps
    return vmem_limit, block_budget


def _pick_tiles(B, O, Kp, N, in_elt, out_elt, budget):
    """Choose (TO, T): O-tile and lane-tile under the VMEM block budget."""
    def blk_bytes(to, t):
        # double-buffered P/W input blocks + double-buffered output block + bias
        return 2 * t * ((B * Kp + to * Kp) * in_elt + B * to * out_elt) \
            + 2 * to * LANE * 4

    o_divs = [O]
    if O % SUBLANE == 0:
        o_divs += [d for d in range(O - SUBLANE, 0, -SUBLANE) if O % d == 0]

    di = 0
    to = o_divs[di]
    # Shrink the O tile until the minimum (T=128) block fits the budget.
    while blk_bytes(to, LANE) > budget and di + 1 < len(o_divs):
        di += 1
        to = o_divs[di]
    # TODO(synk): if even (TO=8, T=128) exceeds the budget (huge C*kh*kw), the
    # K axis must also be gridded (f32 VMEM accumulator + pl.when
    # init/finalize); not needed at these sizes.

    n_lane = _round_up(N, LANE)
    t = LANE
    for cand in (512, 256, 128):      # 512 lanes is within ~1% of HBM roofline
        if cand <= n_lane and blk_bytes(to, cand) <= budget:
            t = cand
            break

    def n_blocks(to_, t_):
        return (O // to_) * (-(-N // t_))

    # Guarantee >=4 grid blocks when possible: lets BlockSpec double-buffering
    # overlap DMA with compute and gives v7x's two TensorCores work.
    while t > LANE and n_blocks(to, t) < 4:
        t //= 2
    while n_blocks(to, t) < 4 and di + 1 < len(o_divs):
        di += 1
        to = o_divs[di]
    return to, t


def prepare_conv_local(weights, *, batch_size, compute_dtype=jnp.bfloat16):
    """One-time re-layout of the locally connected weights (module-init time).

    Hoisted out of the forward: otherwise every call re-transposes the largest
    tensor (~3x the minimum weight HBM traffic on an HBM-bound op).
    Returns (wm, meta): wm is (O, Kp, Np) in compute_dtype, lane-dense in the
    output-position axis; meta is a dict of static tiling ints.
    """
    OH, OW, O, C, kh, kw = weights.shape
    assert kh == kw, "reference einsum 'bchw,ocwh->bo' requires square kernels"
    K = C * kh * kw
    Kp = _round_up(K, SUBLANE)       # pad K once -> sublane-aligned chunk loads
    N = OH * OW

    in_elt = np.dtype(compute_dtype).itemsize
    vmem_limit, budget = _vmem_budget()
    TO, T = _pick_tiles(batch_size, O, Kp, N, in_elt, 4, budget)
    Np = _round_up(N, T)

    # (OH,OW,O,C,kh,kw) -> (O, Kp, Np).  The reference pairs patch[b,c,p,q]
    # with weights[i,j,o,c,q,p] (kernel-dim transpose inside the einsum),
    # hence axes (2, 3, 5, 4, 0, 1); valid because kh == kw.
    Wm = jnp.transpose(weights, (2, 3, 5, 4, 0, 1)).reshape(O, K, N)
    Wm = jnp.pad(Wm, ((0, 0), (0, Kp - K), (0, Np - N)))
    Wm = Wm.astype(compute_dtype)    # bf16 stream: halves the dominant traffic

    meta = dict(OH=OH, OW=OW, O=O, C=C, kh=kh, kw=kw, K=K, Kp=Kp,
                N=N, Np=Np, T=T, TO=TO, vmem_limit=vmem_limit,
                compute_dtype=compute_dtype)
    return Wm, meta


def _make_kernel(has_bias, chunk=SUBLANE):
    """Kernel over one (O-tile, lane-tile) block.

    Blocks: p_ref:(B,Kp,T)  w_ref:(TO,Kp,T)  [b_ref:(TO,128)]  o_ref:(B,TO,T)
    Computes out[b,o,t] = sum_k P[b,k,t] * W[o,k,t] (+ bias[o]), f32 accum.
    """
    def kernel(*refs):
        if has_bias:
            p_ref, w_ref, b_ref, o_ref = refs
        else:
            p_ref, w_ref, o_ref = refs
        nb, kp, t = p_ref.shape
        to = w_ref.shape[0]
        n_chunks = kp // chunk

        def chunk_update(c, acc):
            if isinstance(c, int):
                k0 = c * chunk
            else:
                k0 = pl.multiple_of(c * chunk, chunk)
            # Whole-vreg, sublane-aligned chunk loads (Kp is a multiple of 8).
            pk = p_ref[:, pl.ds(k0, chunk), :].astype(jnp.float32)   # (B, 8, T)
            wk = w_ref[:, pl.ds(k0, chunk), :].astype(jnp.float32)   # (TO, 8, T)
            # 8 lane-parallel FMAs per chunk on the VPU; the kernel is
            # HBM-bound so VALU/XLU have huge slack (MXU would be <1%
            # utilized at these B/O sizes).
            for s in range(chunk):
                acc = acc + pk[:, s, :][:, None, :] * wk[:, s, :][None, :, :]
            return acc

        acc = jnp.zeros((nb, to, t), dtype=jnp.float32)
        if n_chunks <= 8:
            for c in range(n_chunks):          # small K: cheap static unroll
                acc = chunk_update(c, acc)
        else:                                  # large K: bounded code size
            acc = lax.fori_loop(0, n_chunks, chunk_update, acc, unroll=2)

        if has_bias:
            acc = acc + b_ref[...][:, :1][None, :, :]   # (1, TO, 1) broadcast
        o_ref[...] = acc.astype(o_ref.dtype)
    return kernel


def conv_local_2d(x, wm, bias, *, meta, stride, padding, padding_mode="constant"):
    """Forward pass. x:(B,C,H,W); wm/meta from prepare_conv_local; bias:(O,)|None."""
    if x.ndim < 4:
        raise ValueError(
            f"Local 2D Convolution with shape length of 4 instead of {x.ndim}")
    B, C, H, W = x.shape
    kh, kw = meta["kh"], meta["kw"]
    sh, sw = stride
    OH = (H - kh + 2 * padding) // sh + 1
    OW = (W - kw + 2 * padding) // sw + 1
    assert (OH, OW, C) == (meta["OH"], meta["OW"], meta["C"]), "shape mismatch"

    O, K, Kp = meta["O"], meta["K"], meta["Kp"]
    N, Np, T, TO = meta["N"], meta["Np"], meta["T"], meta["TO"]
    cdt = meta["compute_dtype"]

    if padding > 0:
        mode_map = {"constant": "constant", "reflect": "reflect",
                    "replicate": "edge", "circular": "wrap"}
        x = jnp.pad(x, ((0, 0), (0, 0), (padding, padding), (padding, padding)),
                    mode=mode_map[padding_mode])
    xc = x.astype(cdt)   # build im2col directly in the compute dtype

    # im2col as kh*kw shifted strided slices -> P:(B, Kp, Np); position axis
    # LAST so it maps onto the 128-wide vector lanes.
    # TODO(synk): for B >~ O, avoid materializing P in HBM by passing the
    # padded x whole (pl.ANY) and doing im2col inside the kernel; at B=2, O=8
    # the P stream is ~25% of the weight stream so it is left as-is.
    slices = []
    for p in range(kh):
        for q in range(kw):
            sl = xc[:, :, p:p + (OH - 1) * sh + 1:sh, q:q + (OW - 1) * sw + 1:sw]
            slices.append(sl)                                   # (B, C, OH, OW)
    P = jnp.stack(slices, axis=2).reshape(B, K, N)
    P = jnp.pad(P, ((0, 0), (0, Kp - K), (0, Np - N)))          # zero pad: exact

    has_bias = bias is not None
    inputs = [P, wm]
    in_specs = [
        pl.BlockSpec((B, Kp, T), lambda n, oi: (0, 0, n)),    # patches (reused
                                                              #  across O tiles)
        pl.BlockSpec((TO, Kp, T), lambda n, oi: (oi, 0, n)),  # per-pos weights
    ]
    if has_bias:
        # Lane-dense (O, 128) bias block: no lane-sparse (O,1) masked DMA.
        inputs.append(jnp.broadcast_to(bias.astype(jnp.float32)[:, None],
                                       (O, LANE)))
        in_specs.append(pl.BlockSpec((TO, LANE), lambda n, oi: (oi, 0)))

    in_elt = np.dtype(cdt).itemsize
    cost = pl.CostEstimate(
        flops=2 * B * O * K * N,
        transcendentals=0,
        bytes_accessed=int((P.size + wm.size) * in_elt
                           + B * O * Np * x.dtype.itemsize))

    out_flat = pl.pallas_call(
        _make_kernel(has_bias),
        out_shape=jax.ShapeDtypeStruct((B, O, Np), x.dtype),
        grid_spec=pltpu.PrefetchScalarGridSpec(
            num_scalar_prefetch=0,
            grid=(Np // T, O // TO),      # O tiles innermost -> P block reused
            in_specs=in_specs,
            out_specs=pl.BlockSpec((B, TO, T), lambda n, oi: (0, oi, n)),
        ),
        compiler_params=pltpu.CompilerParams(
            # Both axes independent -> v7x can shard blocks over its 2 TCs.
            dimension_semantics=("parallel", "parallel"),
            vmem_limit_bytes=meta["vmem_limit"],
        ),
        cost_estimate=cost,
    )(*inputs)

    # Output already lane-dense in (B, O, N): NCHW result is a pure reshape.
    return out_flat[:, :, :N].reshape(B, O, OH, OW)


if __name__ == "__main__":
    key = jax.random.PRNGKey(0)
    B, C, H, W = 2, 4, 16, 16
    O = 8
    kh = kw = 3
    stride = (1, 1)
    padding = 1
    OH = (H - kh + 2 * padding) // stride[0] + 1
    OW = (W - kw + 2 * padding) // stride[1] + 1

    kx, kw_key = jax.random.split(key)
    x = jax.random.normal(kx, (B, C, H, W), dtype=jnp.float32)

    # Deterministic xavier-uniform init matching torch's fan computation for a
    # 6-D tensor of shape (OH, OW, O, C, kh, kw).
    receptive = O * C * kh * kw
    fan_in, fan_out = OW * receptive, OH * receptive
    bound = (6.0 / (fan_in + fan_out)) ** 0.5
    weights = jax.random.uniform(kw_key, (OH, OW, O, C, kh, kw),
                                 dtype=jnp.float32, minval=-bound, maxval=bound)
    bias = jnp.zeros((O,), dtype=jnp.float32)   # module inits bias to zeros

    # One-time weight re-layout (module-init time), then the per-call forward.
    wm, meta = prepare_conv_local(weights, batch_size=B)
    fwd = jax.jit(functools.partial(conv_local_2d, meta=meta, stride=stride,
                                    padding=padding, padding_mode="constant"))
    out = jax.block_until_ready(fwd(x, wm, bias))

    # Pure-JAX f32 reference of the PyTorch forward (einsum 'bchw,ocwh->bo').
    xp = jnp.pad(x, ((0, 0), (0, 0), (padding, padding), (padding, padding)))
    rows = jnp.arange(OH)[:, None] * stride[0] + jnp.arange(kh)[None, :]
    cols = jnp.arange(OW)[:, None] * stride[1] + jnp.arange(kw)[None, :]
    patches = xp[:, :, rows[:, None, :, None], cols[None, :, None, :]]  # (B,C,OH,OW,kh,kw)
    patches = jnp.transpose(patches, (2, 3, 0, 1, 4, 5))                # (OH,OW,B,C,kh,kw)
    ref = jnp.einsum('ijbcpq,ijocqp->boij', patches, weights)
    ref = ref + bias[None, :, None, None]

    assert out.shape == (B, O, OH, OW), out.shape
    # Operands stream in bf16 (f32 accumulation) -> slightly looser tolerance.
    assert jnp.allclose(out, ref, atol=2e-2, rtol=2e-2), \
        float(jnp.max(jnp.abs(out - ref)))
    print("KERNEL_OK")
</pallas_src>

<mosaic_0001>
module attributes {stable_mosaic.version = 11 : i64} {
  func.func @kernel(%arg0: i32, %arg1: i32, %arg2: memref<2x40x128xbf16, #tpu.memory_space<vmem>>, %arg3: memref<8x40x128xbf16, #tpu.memory_space<vmem>>, %arg4: memref<8x128xf32, #tpu.memory_space<vmem>>, %arg5: memref<2x8x128xf32, #tpu.memory_space<vmem>>) attributes {dimension_semantics = [#tpu.dimension_semantics<parallel>, #tpu.dimension_semantics<parallel>], iteration_bounds = array<i64: 2, 1>, scalar_prefetch = 0 : i64, scratch_operands = 0 : i64, tpu.core_type = #tpu.core_type<tc>, window_params = [{transform_indices = @transform_0, window_bounds = array<i64: 2, 40, 128>}, {transform_indices = @transform_1, window_bounds = array<i64: 8, 40, 128>}, {transform_indices = @transform_2, window_bounds = array<i64: 8, 128>}, {transform_indices = @transform_3, window_bounds = array<i64: 2, 8, 128>}]} {
    %cst = arith.constant 0.000000e+00 : f32
    %0 = vector.broadcast %cst : f32 to vector<2x8x128xf32>
    %c0 = arith.constant 0 : index
    %c0_0 = arith.constant 0 : index
    %c0_1 = arith.constant 0 : index
    %1 = vector.load %arg2[%c0, %c0_0, %c0_1] : memref<2x40x128xbf16, #tpu.memory_space<vmem>>, vector<2x8x128xbf16>
    %2 = arith.extf %1 : vector<2x8x128xbf16> to vector<2x8x128xf32>
    %c0_2 = arith.constant 0 : index
    %c0_3 = arith.constant 0 : index
    %c0_4 = arith.constant 0 : index
    %3 = vector.load %arg3[%c0_2, %c0_3, %c0_4] : memref<8x40x128xbf16, #tpu.memory_space<vmem>>, vector<8x8x128xbf16>
    %4 = arith.extf %3 : vector<8x8x128xbf16> to vector<8x8x128xf32>
    %5 = vector.extract_strided_slice %2 {offsets = [0, 0, 0], sizes = [2, 1, 128], strides = [1, 1, 1]} : vector<2x8x128xf32> to vector<2x1x128xf32>
    %6 = vector.shape_cast %5 : vector<2x1x128xf32> to vector<2x128xf32>
    %7 = vector.shape_cast %6 : vector<2x128xf32> to vector<2x1x128xf32>
    %8 = vector.extract_strided_slice %4 {offsets = [0, 0, 0], sizes = [8, 1, 128], strides = [1, 1, 1]} : vector<8x8x128xf32> to vector<8x1x128xf32>
    %9 = vector.shape_cast %8 : vector<8x1x128xf32> to vector<8x128xf32>
    %10 = vector.shape_cast %9 : vector<8x128xf32> to vector<1x8x128xf32>
    %11 = vector.broadcast %7 : vector<2x1x128xf32> to vector<2x8x128xf32>
    %12 = vector.broadcast %10 : vector<1x8x128xf32> to vector<2x8x128xf32>
    %13 = arith.mulf %11, %12 : vector<2x8x128xf32>
    %14 = arith.addf %0, %13 : vector<2x8x128xf32>
    %15 = vector.extract_strided_slice %2 {offsets = [0, 1, 0], sizes = [2, 1, 128], strides = [1, 1, 1]} : vector<2x8x128xf32> to vector<2x1x128xf32>
    %16 = vector.shape_cast %15 : vector<2x1x128xf32> to vector<2x128xf32>
    %17 = vector.shape_cast %16 : vector<2x128xf32> to vector<2x1x128xf32>
    %18 = vector.extract_strided_slice %4 {offsets = [0, 1, 0], sizes = [8, 1, 128], strides = [1, 1, 1]} : vector<8x8x128xf32> to vector<8x1x128xf32>
    %19 = vector.shape_cast %18 : vector<8x1x128xf32> to vector<8x128xf32>
    %20 = vector.shape_cast %19 : vector<8x128xf32> to vector<1x8x128xf32>
    %21 = vector.broadcast %17 : vector<2x1x128xf32> to vector<2x8x128xf32>
    %22 = vector.broadcast %20 : vector<1x8x128xf32> to vector<2x8x128xf32>
    %23 = arith.mulf %21, %22 : vector<2x8x128xf32>
    %24 = arith.addf %14, %23 : vector<2x8x128xf32>
    %25 = vector.extract_strided_slice %2 {offsets = [0, 2, 0], sizes = [2, 1, 128], strides = [1, 1, 1]} : vector<2x8x128xf32> to vector<2x1x128xf32>
    %26 = vector.shape_cast %25 : vector<2x1x128xf32> to vector<2x128xf32>
    %27 = vector.shape_cast %26 : vector<2x128xf32> to vector<2x1x128xf32>
    %28 = vector.extract_strided_slice %4 {offsets = [0, 2, 0], sizes = [8, 1, 128], strides = [1, 1, 1]} : vector<8x8x128xf32> to vector<8x1x128xf32>
    %29 = vector.shape_cast %28 : vector<8x1x128xf32> to vector<8x128xf32>
    %30 = vector.shape_cast %29 : vector<8x128xf32> to vector<1x8x128xf32>
    %31 = vector.broadcast %27 : vector<2x1x128xf32> to vector<2x8x128xf32>
    %32 = vector.broadcast %30 : vector<1x8x128xf32> to vector<2x8x128xf32>
    %33 = arith.mulf %31, %32 : vector<2x8x128xf32>
    %34 = arith.addf %24, %33 : vector<2x8x128xf32>
    %35 = vector.extract_strided_slice %2 {offsets = [0, 3, 0], sizes = [2, 1, 128], strides = [1, 1, 1]} : vector<2x8x128xf32> to vector<2x1x128xf32>
    %36 = vector.shape_cast %35 : vector<2x1x128xf32> to vector<2x128xf32>
    %37 = vector.shape_cast %36 : vector<2x128xf32> to vector<2x1x128xf32>
    %38 = vector.extract_strided_slice %4 {offsets = [0, 3, 0], sizes = [8, 1, 128], strides = [1, 1, 1]} : vector<8x8x128xf32> to vector<8x1x128xf32>
    %39 = vector.shape_cast %38 : vector<8x1x128xf32> to vector<8x128xf32>
    %40 = vector.shape_cast %39 : vector<8x128xf32> to vector<1x8x128xf32>
    %41 = vector.broadcast %37 : vector<2x1x128xf32> to vector<2x8x128xf32>
    %42 = vector.broadcast %40 : vector<1x8x128xf32> to vector<2x8x128xf32>
    %43 = arith.mulf %41, %42 : vector<2x8x128xf32>
    %44 = arith.addf %34, %43 : vector<2x8x128xf32>
    %45 = vector.extract_strided_slice %2 {offsets = [0, 4, 0], sizes = [2, 1, 128], strides = [1, 1, 1]} : vector<2x8x128xf32> to vector<2x1x128xf32>
    %46 = vector.shape_cast %45 : vector<2x1x128xf32> to vector<2x128xf32>
    %47 = vector.shape_cast %46 : vector<2x128xf32> to vector<2x1x128xf32>
    %48 = vector.extract_strided_slice %4 {offsets = [0, 4, 0], sizes = [8, 1, 128], strides = [1, 1, 1]} : vector<8x8x128xf32> to vector<8x1x128xf32>
    %49 = vector.shape_cast %48 : vector<8x1x128xf32> to vector<8x128xf32>
    %50 = vector.shape_cast %49 : vector<8x128xf32> to vector<1x8x128xf32>
    %51 = vector.broadcast %47 : vector<2x1x128xf32> to vector<2x8x128xf32>
    %52 = vector.broadcast %50 : vector<1x8x128xf32> to vector<2x8x128xf32>
    %53 = arith.mulf %51, %52 : vector<2x8x128xf32>
    %54 = arith.addf %44, %53 : vector<2x8x128xf32>
    %55 = vector.extract_strided_slice %2 {offsets = [0, 5, 0], sizes = [2, 1, 128], strides = [1, 1, 1]} : vector<2x8x128xf32> to vector<2x1x128xf32>
    %56 = vector.shape_cast %55 : vector<2x1x128xf32> to vector<2x128xf32>
    %57 = vector.shape_cast %56 : vector<2x128xf32> to vector<2x1x128xf32>
    %58 = vector.extract_strided_slice %4 {offsets = [0, 5, 0], sizes = [8, 1, 128], strides = [1, 1, 1]} : vector<8x8x128xf32> to vector<8x1x128xf32>
    %59 = vector.shape_cast %58 : vector<8x1x128xf32> to vector<8x128xf32>
    %60 = vector.shape_cast %59 : vector<8x128xf32> to vector<1x8x128xf32>
    %61 = vector.broadcast %57 : vector<2x1x128xf32> to vector<2x8x128xf32>
    %62 = vector.broadcast %60 : vector<1x8x128xf32> to vector<2x8x128xf32>
    %63 = arith.mulf %61, %62 : vector<2x8x128xf32>
    %64 = arith.addf %54, %63 : vector<2x8x128xf32>
    %65 = vector.extract_strided_slice %2 {offsets = [0, 6, 0], sizes = [2, 1, 128], strides = [1, 1, 1]} : vector<2x8x128xf32> to vector<2x1x128xf32>
    %66 = vector.shape_cast %65 : vector<2x1x128xf32> to vector<2x128xf32>
    %67 = vector.shape_cast %66 : vector<2x128xf32> to vector<2x1x128xf32>
    %68 = vector.extract_strided_slice %4 {offsets = [0, 6, 0], sizes = [8, 1, 128], strides = [1, 1, 1]} : vector<8x8x128xf32> to vector<8x1x128xf32>
    %69 = vector.shape_cast %68 : vector<8x1x128xf32> to vector<8x128xf32>
    %70 = vector.shape_cast %69 : vector<8x128xf32> to vector<1x8x128xf32>
    %71 = vector.broadcast %67 : vector<2x1x128xf32> to vector<2x8x128xf32>
    %72 = vector.broadcast %70 : vector<1x8x128xf32> to vector<2x8x128xf32>
    %73 = arith.mulf %71, %72 : vector<2x8x128xf32>
    %74 = arith.addf %64, %73 : vector<2x8x128xf32>
    %75 = vector.extract_strided_slice %2 {offsets = [0, 7, 0], sizes = [2, 1, 128], strides = [1, 1, 1]} : vector<2x8x128xf32> to vector<2x1x128xf32>
    %76 = vector.shape_cast %75 : vector<2x1x128xf32> to vector<2x128xf32>
    %77 = vector.shape_cast %76 : vector<2x128xf32> to vector<2x1x128xf32>
    %78 = vector.extract_strided_slice %4 {offsets = [0, 7, 0], sizes = [8, 1, 128], strides = [1, 1, 1]} : vector<8x8x128xf32> to vector<8x1x128xf32>
    %79 = vector.shape_cast %78 : vector<8x1x128xf32> to vector<8x128xf32>
    %80 = vector.shape_cast %79 : vector<8x128xf32> to vector<1x8x128xf32>
    %81 = vector.broadcast %77 : vector<2x1x128xf32> to vector<2x8x128xf32>
    %82 = vector.broadcast %80 : vector<1x8x128xf32> to vector<2x8x128xf32>
    %83 = arith.mulf %81, %82 : vector<2x8x128xf32>
    %84 = arith.addf %74, %83 : vector<2x8x128xf32>
    %c0_5 = arith.constant 0 : index
    %c8 = arith.constant 8 : index
    %c0_6 = arith.constant 0 : index
    %85 = vector.load %arg2[%c0_5, %c8, %c0_6] : memref<2x40x128xbf16, #tpu.memory_space<vmem>>, vector<2x8x128xbf16>
    %86 = arith.extf %85 : vector<2x8x128xbf16> to vector<2x8x128xf32>
    %c0_7 = arith.constant 0 : index
    %c8_8 = arith.constant 8 : index
    %c0_9 = arith.constant 0 : index
    %87 = vector.load %arg3[%c0_7, %c8_8, %c0_9] : memref<8x40x128xbf16, #tpu.memory_space<vmem>>, vector<8x8x128xbf16>
    %88 = arith.extf %87 : vector<8x8x128xbf16> to vector<8x8x128xf32>
    %89 = vector.extract_strided_slice %86 {offsets = [0, 0, 0], sizes = [2, 1, 128], strides = [1, 1, 1]} : vector<2x8x128xf32> to vector<2x1x128xf32>
    %90 = vector.shape_cast %89 : vector<2x1x128xf32> to vector<2x128xf32>
    %91 = vector.shape_cast %90 : vector<2x128xf32> to vector<2x1x128xf32>
    %92 = vector.extract_strided_slice %88 {offsets = [0, 0, 0], sizes = [8, 1, 128], strides = [1, 1, 1]} : vector<8x8x128xf32> to vector<8x1x128xf32>
    %93 = vector.shape_cast %92 : vector<8x1x128xf32> to vector<8x128xf32>
    %94 = vector.shape_cast %93 : vector<8x128xf32> to vector<1x8x128xf32>
    %95 = vector.broadcast %91 : vector<2x1x128xf32> to vector<2x8x128xf32>
    %96 = vector.broadcast %94 : vector<1x8x128xf32> to vector<2x8x128xf32>
    %97 = arith.mulf %95, %96 : vector<2x8x128xf32>
    %98 = arith.addf %84, %97 : vector<2x8x128xf32>
    %99 = vector.extract_strided_slice %86 {offsets = [0, 1, 0], sizes = [2, 1, 128], strides = [1, 1, 1]} : vector<2x8x128xf32> to vector<2x1x128xf32>
    %100 = vector.shape_cast %99 : vector<2x1x128xf32> to vector<2x128xf32>
    %101 = vector.shape_cast %100 : vector<2x128xf32> to vector<2x1x128xf32>
    %102 = vector.extract_strided_slice %88 {offsets = [0, 1, 0], sizes = [8, 1, 128], strides = [1, 1, 1]} : vector<8x8x128xf32> to vector<8x1x128xf32>
    %103 = vector.shape_cast %102 : vector<8x1x128xf32> to vector<8x128xf32>
    %104 = vector.shape_cast %103 : vector<8x128xf32> to vector<1x8x128xf32>
    %105 = vector.broadcast %101 : vector<2x1x128xf32> to vector<2x8x128xf32>
    %106 = vector.broadcast %104 : vector<1x8x128xf32> to vector<2x8x128xf32>
    %107 = arith.mulf %105, %106 : vector<2x8x128xf32>
    %108 = arith.addf %98, %107 : vector<2x8x128xf32>
    %109 = vector.extract_strided_slice %86 {offsets = [0, 2, 0], sizes = [2, 1, 128], strides = [1, 1, 1]} : vector<2x8x128xf32> to vector<2x1x128xf32>
    %110 = vector.shape_cast %109 : vector<2x1x128xf32> to vector<2x128xf32>
    %111 = vector.shape_cast %110 : vector<2x128xf32> to vector<2x1x128xf32>
    %112 = vector.extract_strided_slice %88 {offsets = [0, 2, 0], sizes = [8, 1, 128], strides = [1, 1, 1]} : vector<8x8x128xf32> to vector<8x1x128xf32>
    %113 = vector.shape_cast %112 : vector<8x1x128xf32> to vector<8x128xf32>
    %114 = vector.shape_cast %113 : vector<8x128xf32> to vector<1x8x128xf32>
    %115 = vector.broadcast %111 : vector<2x1x128xf32> to vector<2x8x128xf32>
    %116 = vector.broadcast %114 : vector<1x8x128xf32> to vector<2x8x128xf32>
    %117 = arith.mulf %115, %116 : vector<2x8x128xf32>
    %118 = arith.addf %108, %117 : vector<2x8x128xf32>
    %119 = vector.extract_strided_slice %86 {offsets = [0, 3, 0], sizes = [2, 1, 128], strides = [1, 1, 1]} : vector<2x8x128xf32> to vector<2x1x128xf32>
    %120 = vector.shape_cast %119 : vector<2x1x128xf32> to vector<2x128xf32>
    %121 = vector.shape_cast %120 : vector<2x128xf32> to vector<2x1x128xf32>
    %122 = vector.extract_strided_slice %88 {offsets = [0, 3, 0], sizes = [8, 1, 128], strides = [1, 1, 1]} : vector<8x8x128xf32> to vector<8x1x128xf32>
    %123 = vector.shape_cast %122 : vector<8x1x128xf32> to vector<8x128xf32>
    %124 = vector.shape_cast %123 : vector<8x128xf32> to vector<1x8x128xf32>
    %125 = vector.broadcast %121 : vector<2x1x128xf32> to vector<2x8x128xf32>
    %126 = vector.broadcast %124 : vector<1x8x128xf32> to vector<2x8x128xf32>
    %127 = arith.mulf %125, %126 : vector<2x8x128xf32>
    %128 = arith.addf %118, %127 : vector<2x8x128xf32>
    %129 = vector.extract_strided_slice %86 {offsets = [0, 4, 0], sizes = [2, 1, 128], strides = [1, 1, 1]} : vector<2x8x128xf32> to vector<2x1x128xf32>
    %130 = vector.shape_cast %129 : vector<2x1x128xf32> to vector<2x128xf32>
    %131 = vector.shape_cast %130 : vector<2x128xf32> to vector<2x1x128xf32>
    %132 = vector.extract_strided_slice %88 {offsets = [0, 4, 0], sizes = [8, 1, 128], strides = [1, 1, 1]} : vector<8x8x128xf32> to vector<8x1x128xf32>
    %133 = vector.shape_cast %132 : vector<8x1x128xf32> to vector<8x128xf32>
    %134 = vector.shape_cast %133 : vector<8x128xf32> to vector<1x8x128xf32>
    %135 = vector.broadcast %131 : vector<2x1x128xf32> to vector<2x8x128xf32>
    %136 = vector.broadcast %134 : vector<1x8x128xf32> to vector<2x8x128xf32>
    %137 = arith.mulf %135, %136 : vector<2x8x128xf32>
    %138 = arith.addf %128, %137 : vector<2x8x128xf32>
    %139 = vector.extract_strided_slice %86 {offsets = [0, 5, 0], sizes = [2, 1, 128], strides = [1, 1, 1]} : vector<2x8x128xf32> to vector<2x1x128xf32>
    %140 = vector.shape_cast %139 : vector<2x1x128xf32> to vector<2x128xf32>
    %141 = vector.shape_cast %140 : vector<2x128xf32> to vector<2x1x128xf32>
    %142 = vector.extract_strided_slice %88 {offsets = [0, 5, 0], sizes = [8, 1, 128], strides = [1, 1, 1]} : vector<8x8x128xf32> to vector<8x1x128xf32>
    %143 = vector.shape_cast %142 : vector<8x1x128xf32> to vector<8x128xf32>
    %144 = vector.shape_cast %143 : vector<8x128xf32> to vector<1x8x128xf32>
    %145 = vector.broadcast %141 : vector<2x1x128xf32> to vector<2x8x128xf32>
    %146 = vector.broadcast %144 : vector<1x8x128xf32> to vector<2x8x128xf32>
    %147 = arith.mulf %145, %146 : vector<2x8x128xf32>
    %148 = arith.addf %138, %147 : vector<2x8x128xf32>
    %149 = vector.extract_strided_slice %86 {offsets = [0, 6, 0], sizes = [2, 1, 128], strides = [1, 1, 1]} : vector<2x8x128xf32> to vector<2x1x128xf32>
    %150 = vector.shape_cast %149 : vector<2x1x128xf32> to vector<2x128xf32>
    %151 = vector.shape_cast %150 : vector<2x128xf32> to vector<2x1x128xf32>
    %152 = vector.extract_strided_slice %88 {offsets = [0, 6, 0], sizes = [8, 1, 128], strides = [1, 1, 1]} : vector<8x8x128xf32> to vector<8x1x128xf32>
    %153 = vector.shape_cast %152 : vector<8x1x128xf32> to vector<8x128xf32>
    %154 = vector.shape_cast %153 : vector<8x128xf32> to vector<1x8x128xf32>
    %155 = vector.broadcast %151 : vector<2x1x128xf32> to vector<2x8x128xf32>
    %156 = vector.broadcast %154 : vector<1x8x128xf32> to vector<2x8x128xf32>
    %157 = arith.mulf %155, %156 : vector<2x8x128xf32>
    %158 = arith.addf %148, %157 : vector<2x8x128xf32>
    %159 = vector.extract_strided_slice %86 {offsets = [0, 7, 0], sizes = [2, 1, 128], strides = [1, 1, 1]} : vector<2x8x128xf32> to vector<2x1x128xf32>
    %160 = vector.shape_cast %159 : vector<2x1x128xf32> to vector<2x128xf32>
    %161 = vector.shape_cast %160 : vector<2x128xf32> to vector<2x1x128xf32>
    %162 = vector.extract_strided_slice %88 {offsets = [0, 7, 0], sizes = [8, 1, 128], strides = [1, 1, 1]} : vector<8x8x128xf32> to vector<8x1x128xf32>
    %163 = vector.shape_cast %162 : vector<8x1x128xf32> to vector<8x128xf32>
    %164 = vector.shape_cast %163 : vector<8x128xf32> to vector<1x8x128xf32>
    %165 = vector.broadcast %161 : vector<2x1x128xf32> to vector<2x8x128xf32>
    %166 = vector.broadcast %164 : vector<1x8x128xf32> to vector<2x8x128xf32>
    %167 = arith.mulf %165, %166 : vector<2x8x128xf32>
    %168 = arith.addf %158, %167 : vector<2x8x128xf32>
    %c0_10 = arith.constant 0 : index
    %c16 = arith.constant 16 : index
    %c0_11 = arith.constant 0 : index
    %169 = vector.load %arg2[%c0_10, %c16, %c0_11] : memref<2x40x128xbf16, #tpu.memory_space<vmem>>, vector<2x8x128xbf16>
    %170 = arith.extf %169 : vector<2x8x128xbf16> to vector<2x8x128xf32>
    %c0_12 = arith.constant 0 : index
    %c16_13 = arith.constant 16 : index
    %c0_14 = arith.constant 0 : index
    %171 = vector.load %arg3[%c0_12, %c16_13, %c0_14] : memref<8x40x128xbf16, #tpu.memory_space<vmem>>, vector<8x8x128xbf16>
    %172 = arith.extf %171 : vector<8x8x128xbf16> to vector<8x8x128xf32>
    %173 = vector.extract_strided_slice %170 {offsets = [0, 0, 0], sizes = [2, 1, 128], strides = [1, 1, 1]} : vector<2x8x128xf32> to vector<2x1x128xf32>
    %174 = vector.shape_cast %173 : vector<2x1x128xf32> to vector<2x128xf32>
    %175 = vector.shape_cast %174 : vector<2x128xf32> to vector<2x1x128xf32>
    %176 = vector.extract_strided_slice %172 {offsets = [0, 0, 0], sizes = [8, 1, 128], strides = [1, 1, 1]} : vector<8x8x128xf32> to vector<8x1x128xf32>
    %177 = vector.shape_cast %176 : vector<8x1x128xf32> to vector<8x128xf32>
    %178 = vector.shape_cast %177 : vector<8x128xf32> to vector<1x8x128xf32>
    %179 = vector.broadcast %175 : vector<2x1x128xf32> to vector<2x8x128xf32>
    %180 = vector.broadcast %178 : vector<1x8x128xf32> to vector<2x8x128xf32>
    %181 = arith.mulf %179, %180 : vector<2x8x128xf32>
    %182 = arith.addf %168, %181 : vector<2x8x128xf32>
    %183 = vector.extract_strided_slice %170 {offsets = [0, 1, 0], sizes = [2, 1, 128], strides = [1, 1, 1]} : vector<2x8x128xf32> to vector<2x1x128xf32>
    %184 = vector.shape_cast %183 : vector<2x1x128xf32> to vector<2x128xf32>
    %185 = vector.shape_cast %184 : vector<2x128xf32> to vector<2x1x128xf32>
    %186 = vector.extract_strided_slice %172 {offsets = [0, 1, 0], sizes = [8, 1, 128], strides = [1, 1, 1]} : vector<8x8x128xf32> to vector<8x1x128xf32>
    %187 = vector.shape_cast %186 : vector<8x1x128xf32> to vector<8x128xf32>
    %188 = vector.shape_cast %187 : vector<8x128xf32> to vector<1x8x128xf32>
    %189 = vector.broadcast %185 : vector<2x1x128xf32> to vector<2x8x128xf32>
    %190 = vector.broadcast %188 : vector<1x8x128xf32> to vector<2x8x128xf32>
    %191 = arith.mulf %189, %190 : vector<2x8x128xf32>
    %192 = arith.addf %182, %191 : vector<2x8x128xf32>
    %193 = vector.extract_strided_slice %170 {offsets = [0, 2, 0], sizes = [2, 1, 128], strides = [1, 1, 1]} : vector<2x8x128xf32> to vector<2x1x128xf32>
    %194 = vector.shape_cast %193 : vector<2x1x128xf32> to vector<2x128xf32>
    %195 = vector.shape_cast %194 : vector<2x128xf32> to vector<2x1x128xf32>
    %196 = vector.extract_strided_slice %172 {offsets = [0, 2, 0], sizes = [8, 1, 128], strides = [1, 1, 1]} : vector<8x8x128xf32> to vector<8x1x128xf32>
    %197 = vector.shape_cast %196 : vector<8x1x128xf32> to vector<8x128xf32>
    %198 = vector.shape_cast %197 : vector<8x128xf32> to vector<1x8x128xf32>
    %199 = vector.broadcast %195 : vector<2x1x128xf32> to vector<2x8x128xf32>
    %200 = vector.broadcast %198 : vector<1x8x128xf32> to vector<2x8x128xf32>
    %201 = arith.mulf %199, %200 : vector<2x8x128xf32>
    %202 = arith.addf %192, %201 : vector<2x8x128xf32>
    %203 = vector.extract_strided_slice %170 {offsets = [0, 3, 0], sizes = [2, 1, 128], strides = [1, 1, 1]} : vector<2x8x128xf32> to vector<2x1x128xf32>
    %204 = vector.shape_cast %203 : vector<2x1x128xf32> to vector<2x128xf32>
    %205 = vector.shape_cast %204 : vector<2x128xf32> to vector<2x1x128xf32>
    %206 = vector.extract_strided_slice %172 {offsets = [0, 3, 0], sizes = [8, 1, 128], strides = [1, 1, 1]} : vector<8x8x128xf32> to vector<8x1x128xf32>
    %207 = vector.shape_cast %206 : vector<8x1x128xf32> to vector<8x128xf32>
    %208 = vector.shape_cast %207 : vector<8x128xf32> to vector<1x8x128xf32>
    %209 = vector.broadcast %205 : vector<2x1x128xf32> to vector<2x8x128xf32>
    %210 = vector.broadcast %208 : vector<1x8x128xf32> to vector<2x8x128xf32>
    %211 = arith.mulf %209, %210 : vector<2x8x128xf32>
    %212 = arith.addf %202, %211 : vector<2x8x128xf32>
    %213 = vector.extract_strided_slice %170 {offsets = [0, 4, 0], sizes = [2, 1, 128], strides = [1, 1, 1]} : vector<2x8x128xf32> to vector<2x1x128xf32>
    %214 = vector.shape_cast %213 : vector<2x1x128xf32> to vector<2x128xf32>
    %215 = vector.shape_cast %214 : vector<2x128xf32> to vector<2x1x128xf32>
    %216 = vector.extract_strided_slice %172 {offsets = [0, 4, 0], sizes = [8, 1, 128], strides = [1, 1, 1]} : vector<8x8x128xf32> to vector<8x1x128xf32>
    %217 = vector.shape_cast %216 : vector<8x1x128xf32> to vector<8x128xf32>
    %218 = vector.shape_cast %217 : vector<8x128xf32> to vector<1x8x128xf32>
    %219 = vector.broadcast %215 : vector<2x1x128xf32> to vector<2x8x128xf32>
    %220 = vector.broadcast %218 : vector<1x8x128xf32> to vector<2x8x128xf32>
    %221 = arith.mulf %219, %220 : vector<2x8x128xf32>
    %222 = arith.addf %212, %221 : vector<2x8x128xf32>
    %223 = vector.extract_strided_slice %170 {offsets = [0, 5, 0], sizes = [2, 1, 128], strides = [1, 1, 1]} : vector<2x8x128xf32> to vector<2x1x128xf32>
    %224 = vector.shape_cast %223 : vector<2x1x128xf32> to vector<2x128xf32>
    %225 = vector.shape_cast %224 : vector<2x128xf32> to vector<2x1x128xf32>
    %226 = vector.extract_strided_slice %172 {offsets = [0, 5, 0], sizes = [8, 1, 128], strides = [1, 1, 1]} : vector<8x8x128xf32> to vector<8x1x128xf32>
    %227 = vector.shape_cast %226 : vector<8x1x128xf32> to vector<8x128xf32>
    %228 = vector.shape_cast %227 : vector<8x128xf32> to vector<1x8x128xf32>
    %229 = vector.broadcast %225 : vector<2x1x128xf32> to vector<2x8x128xf32>
    %230 = vector.broadcast %228 : vector<1x8x128xf32> to vector<2x8x128xf32>
    %231 = arith.mulf %229, %230 : vector<2x8x128xf32>
    %232 = arith.addf %222, %231 : vector<2x8x128xf32>
    %233 = vector.extract_strided_slice %170 {offsets = [0, 6, 0], sizes = [2, 1, 128], strides = [1, 1, 1]} : vector<2x8x128xf32> to vector<2x1x128xf32>
    %234 = vector.shape_cast %233 : vector<2x1x128xf32> to vector<2x128xf32>
    %235 = vector.shape_cast %234 : vector<2x128xf32> to vector<2x1x128xf32>
    %236 = vector.extract_strided_slice %172 {offsets = [0, 6, 0], sizes = [8, 1, 128], strides = [1, 1, 1]} : vector<8x8x128xf32> to vector<8x1x128xf32>
    %237 = vector.shape_cast %236 : vector<8x1x128xf32> to vector<8x128xf32>
    %238 = vector.shape_cast %237 : vector<8x128xf32> to vector<1x8x128xf32>
    %239 = vector.broadcast %235 : vector<2x1x128xf32> to vector<2x8x128xf32>
    %240 = vector.broadcast %238 : vector<1x8x128xf32> to vector<2x8x128xf32>
    %241 = arith.mulf %239, %240 : vector<2x8x128xf32>
    %242 = arith.addf %232, %241 : vector<2x8x128xf32>
    %243 = vector.extract_strided_slice %170 {offsets = [0, 7, 0], sizes = [2, 1, 128], strides = [1, 1, 1]} : vector<2x8x128xf32> to vector<2x1x128xf32>
    %244 = vector.shape_cast %243 : vector<2x1x128xf32> to vector<2x128xf32>
    %245 = vector.shape_cast %244 : vector<2x128xf32> to vector<2x1x128xf32>
    %246 = vector.extract_strided_slice %172 {offsets = [0, 7, 0], sizes = [8, 1, 128], strides = [1, 1, 1]} : vector<8x8x128xf32> to vector<8x1x128xf32>
    %247 = vector.shape_cast %246 : vector<8x1x128xf32> to vector<8x128xf32>
    %248 = vector.shape_cast %247 : vector<8x128xf32> to vector<1x8x128xf32>
    %249 = vector.broadcast %245 : vector<2x1x128xf32> to vector<2x8x128xf32>
    %250 = vector.broadcast %248 : vector<1x8x128xf32> to vector<2x8x128xf32>
    %251 = arith.mulf %249, %250 : vector<2x8x128xf32>
    %252 = arith.addf %242, %251 : vector<2x8x128xf32>
    %c0_15 = arith.constant 0 : index
    %c24 = arith.constant 24 : index
    %c0_16 = arith.constant 0 : index
    %253 = vector.load %arg2[%c0_15, %c24, %c0_16] : memref<2x40x128xbf16, #tpu.memory_space<vmem>>, vector<2x8x128xbf16>
    %254 = arith.extf %253 : vector<2x8x128xbf16> to vector<2x8x128xf32>
    %c0_17 = arith.constant 0 : index
    %c24_18 = arith.constant 24 : index
    %c0_19 = arith.constant 0 : index
    %255 = vector.load %arg3[%c0_17, %c24_18, %c0_19] : memref<8x40x128xbf16, #tpu.memory_space<vmem>>, vector<8x8x128xbf16>
    %256 = arith.extf %255 : vector<8x8x128xbf16> to vector<8x8x128xf32>
    %257 = vector.extract_strided_slice %254 {offsets = [0, 0, 0], sizes = [2, 1, 128], strides = [1, 1, 1]} : vector<2x8x128xf32> to vector<2x1x128xf32>
    %258 = vector.shape_cast %257 : vector<2x1x128xf32> to vector<2x128xf32>
    %259 = vector.shape_cast %258 : vector<2x128xf32> to vector<2x1x128xf32>
    %260 = vector.extract_strided_slice %256 {offsets = [0, 0, 0], sizes = [8, 1, 128], strides = [1, 1, 1]} : vector<8x8x128xf32> to vector<8x1x128xf32>
    %261 = vector.shape_cast %260 : vector<8x1x128xf32> to vector<8x128xf32>
    %262 = vector.shape_cast %261 : vector<8x128xf32> to vector<1x8x128xf32>
    %263 = vector.broadcast %259 : vector<2x1x128xf32> to vector<2x8x128xf32>
    %264 = vector.broadcast %262 : vector<1x8x128xf32> to vector<2x8x128xf32>
    %265 = arith.mulf %263, %264 : vector<2x8x128xf32>
    %266 = arith.addf %252, %265 : vector<2x8x128xf32>
    %267 = vector.extract_strided_slice %254 {offsets = [0, 1, 0], sizes = [2, 1, 128], strides = [1, 1, 1]} : vector<2x8x128xf32> to vector<2x1x128xf32>
    %268 = vector.shape_cast %267 : vector<2x1x128xf32> to vector<2x128xf32>
    %269 = vector.shape_cast %268 : vector<2x128xf32> to vector<2x1x128xf32>
    %270 = vector.extract_strided_slice %256 {offsets = [0, 1, 0], sizes = [8, 1, 128], strides = [1, 1, 1]} : vector<8x8x128xf32> to vector<8x1x128xf32>
    %271 = vector.shape_cast %270 : vector<8x1x128xf32> to vector<8x128xf32>
    %272 = vector.shape_cast %271 : vector<8x128xf32> to vector<1x8x128xf32>
    %273 = vector.broadcast %269 : vector<2x1x128xf32> to vector<2x8x128xf32>
    %274 = vector.broadcast %272 : vector<1x8x128xf32> to vector<2x8x128xf32>
    %275 = arith.mulf %273, %274 : vector<2x8x128xf32>
    %276 = arith.addf %266, %275 : vector<2x8x128xf32>
    %277 = vector.extract_strided_slice %254 {offsets = [0, 2, 0], sizes = [2, 1, 128], strides = [1, 1, 1]} : vector<2x8x128xf32> to vector<2x1x128xf32>
    %278 = vector.shape_cast %277 : vector<2x1x128xf32> to vector<2x128xf32>
    %279 = vector.shape_cast %278 : vector<2x128xf32> to vector<2x1x128xf32>
    %280 = vector.extract_strided_slice %256 {offsets = [0, 2, 0], sizes = [8, 1, 128], strides = [1, 1, 1]} : vector<8x8x128xf32> to vector<8x1x128xf32>
    %281 = vector.shape_cast %280 : vector<8x1x128xf32> to vector<8x128xf32>
    %282 = vector.shape_cast %281 : vector<8x128xf32> to vector<1x8x128xf32>
    %283 = vector.broadcast %279 : vector<2x1x128xf32> to vector<2x8x128xf32>
    %284 = vector.broadcast %282 : vector<1x8x128xf32> to vector<2x8x128xf32>
    %285 = arith.mulf %283, %284 : vector<2x8x128xf32>
    %286 = arith.addf %276, %285 : vector<2x8x128xf32>
    %287 = vector.extract_strided_slice %254 {offsets = [0, 3, 0], sizes = [2, 1, 128], strides = [1, 1, 1]} : vector<2x8x128xf32> to vector<2x1x128xf32>
    %288 = vector.shape_cast %287 : vector<2x1x128xf32> to vector<2x128xf32>
    %289 = vector.shape_cast %288 : vector<2x128xf32> to vector<2x1x128xf32>
    %290 = vector.extract_strided_slice %256 {offsets = [0, 3, 0], sizes = [8, 1, 128], strides = [1, 1, 1]} : vector<8x8x128xf32> to vector<8x1x128xf32>
    %291 = vector.shape_cast %290 : vector<8x1x128xf32> to vector<8x128xf32>
    %292 = vector.shape_cast %291 : vector<8x128xf32> to vector<1x8x128xf32>
    %293 = vector.broadcast %289 : vector<2x1x128xf32> to vector<2x8x128xf32>
    %294 = vector.broadcast %292 : vector<1x8x128xf32> to vector<2x8x128xf32>
    %295 = arith.mulf %293, %294 : vector<2x8x128xf32>
    %296 = arith.addf %286, %295 : vector<2x8x128xf32>
    %297 = vector.extract_strided_slice %254 {offsets = [0, 4, 0], sizes = [2, 1, 128], strides = [1, 1, 1]} : vector<2x8x128xf32> to vector<2x1x128xf32>
    %298 = vector.shape_cast %297 : vector<2x1x128xf32> to vector<2x128xf32>
    %299 = vector.shape_cast %298 : vector<2x128xf32> to vector<2x1x128xf32>
    %300 = vector.extract_strided_slice %256 {offsets = [0, 4, 0], sizes = [8, 1, 128], strides = [1, 1, 1]} : vector<8x8x128xf32> to vector<8x1x128xf32>
    %301 = vector.shape_cast %300 : vector<8x1x128xf32> to vector<8x128xf32>
    %302 = vector.shape_cast %301 : vector<8x128xf32> to vector<1x8x128xf32>
    %303 = vector.broadcast %299 : vector<2x1x128xf32> to vector<2x8x128xf32>
    %304 = vector.broadcast %302 : vector<1x8x128xf32> to vector<2x8x128xf32>
    %305 = arith.mulf %303, %304 : vector<2x8x128xf32>
    %306 = arith.addf %296, %305 : vector<2x8x128xf32>
    %307 = vector.extract_strided_slice %254 {offsets = [0, 5, 0], sizes = [2, 1, 128], strides = [1, 1, 1]} : vector<2x8x128xf32> to vector<2x1x128xf32>
    %308 = vector.shape_cast %307 : vector<2x1x128xf32> to vector<2x128xf32>
    %309 = vector.shape_cast %308 : vector<2x128xf32> to vector<2x1x128xf32>
    %310 = vector.extract_strided_slice %256 {offsets = [0, 5, 0], sizes = [8, 1, 128], strides = [1, 1, 1]} : vector<8x8x128xf32> to vector<8x1x128xf32>
    %311 = vector.shape_cast %310 : vector<8x1x128xf32> to vector<8x128xf32>
    %312 = vector.shape_cast %311 : vector<8x128xf32> to vector<1x8x128xf32>
    %313 = vector.broadcast %309 : vector<2x1x128xf32> to vector<2x8x128xf32>
    %314 = vector.broadcast %312 : vector<1x8x128xf32> to vector<2x8x128xf32>
    %315 = arith.mulf %313, %314 : vector<2x8x128xf32>
    %316 = arith.addf %306, %315 : vector<2x8x128xf32>
    %317 = vector.extract_strided_slice %254 {offsets = [0, 6, 0], sizes = [2, 1, 128], strides = [1, 1, 1]} : vector<2x8x128xf32> to vector<2x1x128xf32>
    %318 = vector.shape_cast %317 : vector<2x1x128xf32> to vector<2x128xf32>
    %319 = vector.shape_cast %318 : vector<2x128xf32> to vector<2x1x128xf32>
    %320 = vector.extract_strided_slice %256 {offsets = [0, 6, 0], sizes = [8, 1, 128], strides = [1, 1, 1]} : vector<8x8x128xf32> to vector<8x1x128xf32>
    %321 = vector.shape_cast %320 : vector<8x1x128xf32> to vector<8x128xf32>
    %322 = vector.shape_cast %321 : vector<8x128xf32> to vector<1x8x128xf32>
    %323 = vector.broadcast %319 : vector<2x1x128xf32> to vector<2x8x128xf32>
    %324 = vector.broadcast %322 : vector<1x8x128xf32> to vector<2x8x128xf32>
    %325 = arith.mulf %323, %324 : vector<2x8x128xf32>
    %326 = arith.addf %316, %325 : vector<2x8x128xf32>
    %327 = vector.extract_strided_slice %254 {offsets = [0, 7, 0], sizes = [2, 1, 128], strides = [1, 1, 1]} : vector<2x8x128xf32> to vector<2x1x128xf32>
    %328 = vector.shape_cast %327 : vector<2x1x128xf32> to vector<2x128xf32>
    %329 = vector.shape_cast %328 : vector<2x128xf32> to vector<2x1x128xf32>
    %330 = vector.extract_strided_slice %256 {offsets = [0, 7, 0], sizes = [8, 1, 128], strides = [1, 1, 1]} : vector<8x8x128xf32> to vector<8x1x128xf32>
    %331 = vector.shape_cast %330 : vector<8x1x128xf32> to vector<8x128xf32>
    %332 = vector.shape_cast %331 : vector<8x128xf32> to vector<1x8x128xf32>
    %333 = vector.broadcast %329 : vector<2x1x128xf32> to vector<2x8x128xf32>
    %334 = vector.broadcast %332 : vector<1x8x128xf32> to vector<2x8x128xf32>
    %335 = arith.mulf %333, %334 : vector<2x8x128xf32>
    %336 = arith.addf %326, %335 : vector<2x8x128xf32>
    %c0_20 = arith.constant 0 : index
    %c32 = arith.constant 32 : index
    %c0_21 = arith.constant 0 : index
    %337 = vector.load %arg2[%c0_20, %c32, %c0_21] : memref<2x40x128xbf16, #tpu.memory_space<vmem>>, vector<2x8x128xbf16>
    %338 = arith.extf %337 : vector<2x8x128xbf16> to vector<2x8x128xf32>
    %c0_22 = arith.constant 0 : index
    %c32_23 = arith.constant 32 : index
    %c0_24 = arith.constant 0 : index
    %339 = vector.load %arg3[%c0_22, %c32_23, %c0_24] : memref<8x40x128xbf16, #tpu.memory_space<vmem>>, vector<8x8x128xbf16>
    %340 = arith.extf %339 : vector<8x8x128xbf16> to vector<8x8x128xf32>
    %341 = vector.extract_strided_slice %338 {offsets = [0, 0, 0], sizes = [2, 1, 128], strides = [1, 1, 1]} : vector<2x8x128xf32> to vector<2x1x128xf32>
    %342 = vector.shape_cast %341 : vector<2x1x128xf32> to vector<2x128xf32>
    %343 = vector.shape_cast %342 : vector<2x128xf32> to vector<2x1x128xf32>
    %344 = vector.extract_strided_slice %340 {offsets = [0, 0, 0], sizes = [8, 1, 128], strides = [1, 1, 1]} : vector<8x8x128xf32> to vector<8x1x128xf32>
    %345 = vector.shape_cast %344 : vector<8x1x128xf32> to vector<8x128xf32>
    %346 = vector.shape_cast %345 : vector<8x128xf32> to vector<1x8x128xf32>
    %347 = vector.broadcast %343 : vector<2x1x128xf32> to vector<2x8x128xf32>
    %348 = vector.broadcast %346 : vector<1x8x128xf32> to vector<2x8x128xf32>
    %349 = arith.mulf %347, %348 : vector<2x8x128xf32>
    %350 = arith.addf %336, %349 : vector<2x8x128xf32>
    %351 = vector.extract_strided_slice %338 {offsets = [0, 1, 0], sizes = [2, 1, 128], strides = [1, 1, 1]} : vector<2x8x128xf32> to vector<2x1x128xf32>
    %352 = vector.shape_cast %351 : vector<2x1x128xf32> to vector<2x128xf32>
    %353 = vector.shape_cast %352 : vector<2x128xf32> to vector<2x1x128xf32>
    %354 = vector.extract_strided_slice %340 {offsets = [0, 1, 0], sizes = [8, 1, 128], strides = [1, 1, 1]} : vector<8x8x128xf32> to vector<8x1x128xf32>
    %355 = vector.shape_cast %354 : vector<8x1x128xf32> to vector<8x128xf32>
    %356 = vector.shape_cast %355 : vector<8x128xf32> to vector<1x8x128xf32>
    %357 = vector.broadcast %353 : vector<2x1x128xf32> to vector<2x8x128xf32>
    %358 = vector.broadcast %356 : vector<1x8x128xf32> to vector<2x8x128xf32>
    %359 = arith.mulf %357, %358 : vector<2x8x128xf32>
    %360 = arith.addf %350, %359 : vector<2x8x128xf32>
    %361 = vector.extract_strided_slice %338 {offsets = [0, 2, 0], sizes = [2, 1, 128], strides = [1, 1, 1]} : vector<2x8x128xf32> to vector<2x1x128xf32>
    %362 = vector.shape_cast %361 : vector<2x1x128xf32> to vector<2x128xf32>
    %363 = vector.shape_cast %362 : vector<2x128xf32> to vector<2x1x128xf32>
    %364 = vector.extract_strided_slice %340 {offsets = [0, 2, 0], sizes = [8, 1, 128], strides = [1, 1, 1]} : vector<8x8x128xf32> to vector<8x1x128xf32>
    %365 = vector.shape_cast %364 : vector<8x1x128xf32> to vector<8x128xf32>
    %366 = vector.shape_cast %365 : vector<8x128xf32> to vector<1x8x128xf32>
    %367 = vector.broadcast %363 : vector<2x1x128xf32> to vector<2x8x128xf32>
    %368 = vector.broadcast %366 : vector<1x8x128xf32> to vector<2x8x128xf32>
    %369 = arith.mulf %367, %368 : vector<2x8x128xf32>
    %370 = arith.addf %360, %369 : vector<2x8x128xf32>
    %371 = vector.extract_strided_slice %338 {offsets = [0, 3, 0], sizes = [2, 1, 128], strides = [1, 1, 1]} : vector<2x8x128xf32> to vector<2x1x128xf32>
    %372 = vector.shape_cast %371 : vector<2x1x128xf32> to vector<2x128xf32>
    %373 = vector.shape_cast %372 : vector<2x128xf32> to vector<2x1x128xf32>
    %374 = vector.extract_strided_slice %340 {offsets = [0, 3, 0], sizes = [8, 1, 128], strides = [1, 1, 1]} : vector<8x8x128xf32> to vector<8x1x128xf32>
    %375 = vector.shape_cast %374 : vector<8x1x128xf32> to vector<8x128xf32>
    %376 = vector.shape_cast %375 : vector<8x128xf32> to vector<1x8x128xf32>
    %377 = vector.broadcast %373 : vector<2x1x128xf32> to vector<2x8x128xf32>
    %378 = vector.broadcast %376 : vector<1x8x128xf32> to vector<2x8x128xf32>
    %379 = arith.mulf %377, %378 : vector<2x8x128xf32>
    %380 = arith.addf %370, %379 : vector<2x8x128xf32>
    %381 = vector.extract_strided_slice %338 {offsets = [0, 4, 0], sizes = [2, 1, 128], strides = [1, 1, 1]} : vector<2x8x128xf32> to vector<2x1x128xf32>
    %382 = vector.shape_cast %381 : vector<2x1x128xf32> to vector<2x128xf32>
    %383 = vector.shape_cast %382 : vector<2x128xf32> to vector<2x1x128xf32>
    %384 = vector.extract_strided_slice %340 {offsets = [0, 4, 0], sizes = [8, 1, 128], strides = [1, 1, 1]} : vector<8x8x128xf32> to vector<8x1x128xf32>
    %385 = vector.shape_cast %384 : vector<8x1x128xf32> to vector<8x128xf32>
    %386 = vector.shape_cast %385 : vector<8x128xf32> to vector<1x8x128xf32>
    %387 = vector.broadcast %383 : vector<2x1x128xf32> to vector<2x8x128xf32>
    %388 = vector.broadcast %386 : vector<1x8x128xf32> to vector<2x8x128xf32>
    %389 = arith.mulf %387, %388 : vector<2x8x128xf32>
    %390 = arith.addf %380, %389 : vector<2x8x128xf32>
    %391 = vector.extract_strided_slice %338 {offsets = [0, 5, 0], sizes = [2, 1, 128], strides = [1, 1, 1]} : vector<2x8x128xf32> to vector<2x1x128xf32>
    %392 = vector.shape_cast %391 : vector<2x1x128xf32> to vector<2x128xf32>
    %393 = vector.shape_cast %392 : vector<2x128xf32> to vector<2x1x128xf32>
    %394 = vector.extract_strided_slice %340 {offsets = [0, 5, 0], sizes = [8, 1, 128], strides = [1, 1, 1]} : vector<8x8x128xf32> to vector<8x1x128xf32>
    %395 = vector.shape_cast %394 : vector<8x1x128xf32> to vector<8x128xf32>
    %396 = vector.shape_cast %395 : vector<8x128xf32> to vector<1x8x128xf32>
    %397 = vector.broadcast %393 : vector<2x1x128xf32> to vector<2x8x128xf32>
    %398 = vector.broadcast %396 : vector<1x8x128xf32> to vector<2x8x128xf32>
    %399 = arith.mulf %397, %398 : vector<2x8x128xf32>
    %400 = arith.addf %390, %399 : vector<2x8x128xf32>
    %401 = vector.extract_strided_slice %338 {offsets = [0, 6, 0], sizes = [2, 1, 128], strides = [1, 1, 1]} : vector<2x8x128xf32> to vector<2x1x128xf32>
    %402 = vector.shape_cast %401 : vector<2x1x128xf32> to vector<2x128xf32>
    %403 = vector.shape_cast %402 : vector<2x128xf32> to vector<2x1x128xf32>
    %404 = vector.extract_strided_slice %340 {offsets = [0, 6, 0], sizes = [8, 1, 128], strides = [1, 1, 1]} : vector<8x8x128xf32> to vector<8x1x128xf32>
    %405 = vector.shape_cast %404 : vector<8x1x128xf32> to vector<8x128xf32>
    %406 = vector.shape_cast %405 : vector<8x128xf32> to vector<1x8x128xf32>
    %407 = vector.broadcast %403 : vector<2x1x128xf32> to vector<2x8x128xf32>
    %408 = vector.broadcast %406 : vector<1x8x128xf32> to vector<2x8x128xf32>
    %409 = arith.mulf %407, %408 : vector<2x8x128xf32>
    %410 = arith.addf %400, %409 : vector<2x8x128xf32>
    %411 = vector.extract_strided_slice %338 {offsets = [0, 7, 0], sizes = [2, 1, 128], strides = [1, 1, 1]} : vector<2x8x128xf32> to vector<2x1x128xf32>
    %412 = vector.shape_cast %411 : vector<2x1x128xf32> to vector<2x128xf32>
    %413 = vector.shape_cast %412 : vector<2x128xf32> to vector<2x1x128xf32>
    %414 = vector.extract_strided_slice %340 {offsets = [0, 7, 0], sizes = [8, 1, 128], strides = [1, 1, 1]} : vector<8x8x128xf32> to vector<8x1x128xf32>
    %415 = vector.shape_cast %414 : vector<8x1x128xf32> to vector<8x128xf32>
    %416 = vector.shape_cast %415 : vector<8x128xf32> to vector<1x8x128xf32>
    %417 = vector.broadcast %413 : vector<2x1x128xf32> to vector<2x8x128xf32>
    %418 = vector.broadcast %416 : vector<1x8x128xf32> to vector<2x8x128xf32>
    %419 = arith.mulf %417, %418 : vector<2x8x128xf32>
    %420 = arith.addf %410, %419 : vector<2x8x128xf32>
    %c0_25 = arith.constant 0 : index
    %c0_26 = arith.constant 0 : index
    %421 = vector.load %arg4[%c0_25, %c0_26] : memref<8x128xf32, #tpu.memory_space<vmem>>, vector<8x128xf32>
    %422 = vector.extract_strided_slice %421 {offsets = [0, 0], sizes = [8, 1], strides = [1, 1]} : vector<8x128xf32> to vector<8x1xf32>
    %423 = vector.shape_cast %422 : vector<8x1xf32> to vector<1x8x1xf32>
    %424 = vector.broadcast %423 : vector<1x8x1xf32> to vector<2x8x128xf32>
    %425 = arith.addf %420, %424 : vector<2x8x128xf32>
    %c0_27 = arith.constant 0 : index
    %c0_28 = arith.constant 0 : index
    %c0_29 = arith.constant 0 : index
    %426 = vector.load %arg5[%c0_27, %c0_28, %c0_29] : memref<2x8x128xf32, #tpu.memory_space<vmem>>, vector<2x8x128xf32>
    tpu.vector_store %arg5[%c0_27, %c0_28, %c0_29], %425 {strides = array<i32>} : memref<2x8x128xf32, #tpu.memory_space<vmem>>, vector<2x8x128xf32>,
    return
  }
  func.func @transform_0(%arg0: i32, %arg1: i32) -> (i32, i32, i32) {
    %c0_i32 = arith.constant 0 : i32
    %c0_i32_0 = arith.constant 0 : i32
    %c0_i32_1 = arith.constant 0 : i32
    return %c0_i32, %c0_i32_0, %arg0 : i32, i32, i32
  }
  func.func @transform_1(%arg0: i32, %arg1: i32) -> (i32, i32, i32) {
    %c0_i32 = arith.constant 0 : i32
    %c0_i32_0 = arith.constant 0 : i32
    return %arg1, %c0_i32, %arg0 : i32, i32, i32
  }
  func.func @transform_2(%arg0: i32, %arg1: i32) -> (i32, i32) {
    %c0_i32 = arith.constant 0 : i32
    %c0_i32_0 = arith.constant 0 : i32
    return %arg1, %c0_i32 : i32, i32
  }
  func.func @transform_3(%arg0: i32, %arg1: i32) -> (i32, i32, i32) {
    %c0_i32 = arith.constant 0 : i32
    %c0_i32_0 = arith.constant 0 : i32
    return %c0_i32, %arg1, %arg0 : i32, i32, i32
  }
}

</mosaic_0001>

<llo_original>
// kernel: conv_local_2d.1
$region0: #{conv_local_2d.1}
  #allocation0 [shape = 'u32[]', space=smem, size = 0x4, offset = 0x4, fixed_abs, tag = 'smem constant byte address 0x4 - core index']
  #allocation1 [shape = 'u32[144,128]{1,0:T(1,128)}', space=vmem, size = 0x12000, scoped, tag = 'internal scratch']
  %s0 = inlined_call_operand.vmem [shape: bf16[2,40,256], index: 0, kind: input, shape index: {}]
  %s1 = inlined_call_operand.vmem [shape: bf16[8,40,256], index: 1, kind: input, shape index: {}]
  %s2 = inlined_call_operand.vmem [shape: f32[8,128], index: 2, kind: input, shape index: {}]
  %s3 = inlined_call_operand.vmem [shape: f32[2,8,256], index: 3, kind: output, shape index: {}]
  %s4 = sld [smem:[#allocation0]]
  $region161: #{conv_local_2d.1} parent=0
    _
  %s6 = ssub.s32 1, %s4
  %s7 = scalar_select 0, %s6, %s4
  $region1: #{conv_local_2d.1} parent=0
    #allocation2 [shape = 'u8[40960]{0}', space=vmem, size = 0xa000, scoped, tag = 'input window, operand 0']
    #allocation3 [shape = 'u8[163840]{0}', space=vmem, size = 0x28000, scoped, tag = 'input window, operand 1']
    #allocation4 [shape = 'u8[16384]{0}', space=vmem, size = 0x4000, scoped, tag = 'output window, operand 0']
    loop: start=0, step=1, limit=4
    $region2: #{conv_local_2d.1} parent=1 // loop_pre_header
      _
    $region3: #{conv_local_2d.1} parent=1 // loop_header
      %s9 = sphi 0, %s13
      %p10 = scmp.ge.s32.totalorder %s9, 4
      %s16 = sphi 0, %s28
      %s17 = sphi 0, %s24
      %s18 = sphi 0, %s16
      %s19 = sphi 0, %s17
      %s20 = sphi 0, %s18
      %s21 = sphi 0, %s19
      %s31 = sphi 0, %s33
      %s34 = sphi 0, %s31
      %s35 = sphi 0, %s34
      %s51 = sphi 0, %s35
      %s59 = sphi 0, %s61
      %s62 = sphi 0, %s59
      %s63 = sphi 0, %s62
      %s79 = sphi 0, %s63
      %s85 = sphi 0, %s87
      %s88 = sphi 0, %s85
      %s89 = sphi 0, %s88
      %s105 = sphi 0, %s89
      %s113 = sphi 0, %s115
      %s116 = sphi 0, %s113
      %s117 = sphi 0, %s116
      %s133 = sphi 0, %s117
    $region4: #{conv_local_2d.1} parent=1 // loop_header_branch
      %12 = sbr.rel (%p10) target = $region8
    $region5: #{conv_local_2d.1} parent=1 // loop_body
      %s14 = ssub.s32 %s9, 1
      %s15 = ssub.s32 %s9, 2
      %s22 = sadd.s32 1, %s17
      %p23 = scmp.ge.s32.totalorder %s22, 1
      %s24 = scalar_select %p23, 0, %s22
      %s25 = sadd.s32 1, %s16
      %s26 = scalar_select %p23, %s25, %s16
      %p27 = scmp.ge.s32.totalorder %s26, 2
      %s28 = scalar_select %p27, 0, %s26
      %s29 = ssub.s32 %s16, %s28
      %p30 = scmp.eq.s32.totalorder %s29, 0
      %s32 = sadd.s32 %s31, 1
      %s33 = scalar_select %p30, %s31, %s32
      %p36 = pneg %p30
      %p37 = scmp.eq.s32.totalorder %s9, 1
      %p38 = por %p36, %p37
      %p39 = scmp.ne.s32.totalorder %s31, %s34
      %p40 = scmp.eq.s32.totalorder %s9, 0
      %p41 = por %p39, %p40
      %p42 = scmp.ne.s32.totalorder %s31, %s34
      %p43 = scmp.eq.s32.totalorder %s14, 1
      %p44 = por %p42, %p43
      %p45 = scmp.ne.s32.totalorder %s34, %s35
      %p46 = scmp.eq.s32.totalorder %s14, 0
      %p47 = por %p45, %p46
      %p48 = scmp.ne.s32.totalorder %s34, %s35
      %p49 = scmp.eq.s32.totalorder %s15, 1
      %p50 = por %p48, %p49
      %p52 = scmp.ne.s32.totalorder %s35, %s51
      %p53 = scmp.eq.s32.totalorder %s15, 0
      %p54 = por %p52, %p53
      %s55 = ssub.s32 %s17, %s24
      %s56 = ssub.s32 %s16, %s28
      %s57 = sor.u32 %s55, %s56
      %p58 = scmp.eq.s32.totalorder %s57, 0
      %s60 = sadd.s32 %s59, 1
      %s61 = scalar_select %p58, %s59, %s60
      %p64 = pneg %p58
      %p65 = scmp.eq.s32.totalorder %s9, 1
      %p66 = por %p64, %p65
      %p67 = scmp.ne.s32.totalorder %s59, %s62
      %p68 = scmp.eq.s32.totalorder %s9, 0
      %p69 = por %p67, %p68
      %p70 = scmp.ne.s32.totalorder %s59, %s62
      %p71 = scmp.eq.s32.totalorder %s14, 1
      %p72 = por %p70, %p71
      %p73 = scmp.ne.s32.totalorder %s62, %s63
      %p74 = scmp.eq.s32.totalorder %s14, 0
      %p75 = por %p73, %p74
      %p76 = scmp.ne.s32.totalorder %s62, %s63
      %p77 = scmp.eq.s32.totalorder %s15, 1
      %p78 = por %p76, %p77
      %p80 = scmp.ne.s32.totalorder %s63, %s79
      %p81 = scmp.eq.s32.totalorder %s15, 0
      %p82 = por %p80, %p81
      %s83 = ssub.s32 %s17, %s24
      %p84 = scmp.eq.s32.totalorder %s83, 0
      %s86 = sadd.s32 %s85, 1
      %s87 = scalar_select %p84, %s85, %s86
      %p90 = pneg %p84
      %p91 = scmp.eq.s32.totalorder %s9, 1
      %p92 = por %p90, %p91
      %p93 = scmp.ne.s32.totalorder %s85, %s88
      %p94 = scmp.eq.s32.totalorder %s9, 0
      %p95 = por %p93, %p94
      %p96 = scmp.ne.s32.totalorder %s85, %s88
      %p97 = scmp.eq.s32.totalorder %s14, 1
      %p98 = por %p96, %p97
      %p99 = scmp.ne.s32.totalorder %s88, %s89
      %p100 = scmp.eq.s32.totalorder %s14, 0
      %p101 = por %p99, %p100
      %p102 = scmp.ne.s32.totalorder %s88, %s89
      %p103 = scmp.eq.s32.totalorder %s15, 1
      %p104 = por %p102, %p103
      %p106 = scmp.ne.s32.totalorder %s89, %s105
      %p107 = scmp.eq.s32.totalorder %s15, 0
      %p108 = por %p106, %p107
      %s109 = ssub.s32 %s17, %s24
      %s110 = ssub.s32 %s16, %s28
      %s111 = sor.u32 %s109, %s110
      %p112 = scmp.eq.s32.totalorder %s111, 0
      %s114 = sadd.s32 %s113, 1
      %s115 = scalar_select %p112, %s113, %s114
      %p118 = pneg %p112
      %p119 = scmp.eq.s32.totalorder %s9, 1
      %p120 = por %p118, %p119
      %p121 = scmp.ne.s32.totalorder %s113, %s116
      %p122 = scmp.eq.s32.totalorder %s9, 0
      %p123 = por %p121, %p122
      %p124 = scmp.ne.s32.totalorder %s113, %s116
      %p125 = scmp.eq.s32.totalorder %s14, 1
      %p126 = por %p124, %p125
      %p127 = scmp.ne.s32.totalorder %s116, %s117
      %p128 = scmp.eq.s32.totalorder %s14, 0
      %p129 = por %p127, %p128
      %p130 = scmp.ne.s32.totalorder %s116, %s117
      %p131 = scmp.eq.s32.totalorder %s15, 1
      %p132 = por %p130, %p131
      %p134 = scmp.ne.s32.totalorder %s117, %s133
      %p135 = scmp.eq.s32.totalorder %s15, 0
      %p136 = por %p134, %p135
      %p137 = scmp.le.s32.totalorder 1, %s9
      %p138 = scmp.lt.s32.totalorder %s9, 3
      %p139 = pnand %p137, %p138
      %p140 = pneg %p139
      // Predicated region
      $region9: #{conv_local_2d.1} parent=5 // pred_check
        _
      $region10: #{conv_local_2d.1} parent=5 // pred_check_branch
        %142 = sbr.rel (%p139) target = $region12
      $region11: #{conv_local_2d.1} parent=5 // pred_region
        %s143 = ssub.s32 %s9, 1
        // Predicated region
        $region13: #{conv_local_2d.1} parent=11 // pred_check
          %p144 = pneg %p101
        $region14: #{conv_local_2d.1} parent=11 // pred_check_branch
          %146 = sbr.rel (%p144) target = $region16
        $region15: #{conv_local_2d.1} parent=11 // pred_region
          %p147 = scmp.lt.s32.totalorder %s19, 0
          %s148 = scalar_select %p147, %s19, 0
          %s149 = smul.addr %s148, 8
          %s150 = scalar_lea.vmem %s2, %s149
        $region16: #{conv_local_2d.1} parent=11 // pred_fallthru
          _
      $region12: #{conv_local_2d.1} parent=5 // pred_fallthru
        _
      %p151 = scmp.lt.s32.totalorder %s9, 2
      // Predicated region
      $region17: #{conv_local_2d.1} parent=5 // pred_check
        %p152 = pneg %p151
      $region18: #{conv_local_2d.1} parent=5 // pred_check_branch
        %154 = sbr.rel (%p152) target = $region20
      $region19: #{conv_local_2d.1} parent=5 // pred_region
        // Predicated region
        $region21: #{conv_local_2d.1} parent=19 // pred_check
          %p155 = pneg %p41
        $region22: #{conv_local_2d.1} parent=19 // pred_check_branch
          %157 = sbr.rel (%p155) target = $region24
        $region23: #{conv_local_2d.1} parent=19 // pred_region
          %s158 = sand.u32 %s31, 1
          %s159 = sand.u32 %s31, 1
          %s160 = smul.addr %s159, 40
          %s161 = scalar_lea.vmem [#allocation2], %s160
          %s162 = smul.addr %s16, 4
          %s163 = scalar_lea.vmem %s0, %s162
          // Predicated region
          $region25: #{conv_local_2d.1} parent=23 // pred_check
            _
          $region26: #{conv_local_2d.1} parent=23 // pred_check_branch
            %165 = sbr.rel (0) target = $region28
          $region27: #{conv_local_2d.1} parent=23 // pred_region
            // Predicated region
            $region29: #{conv_local_2d.1} parent=27 // pred_check
              _
            $region30: #{conv_local_2d.1} parent=27 // pred_check_branch
              %167 = sbr.rel target = $region32
            $region31: #{conv_local_2d.1} parent=27 // pred_region
              // Predicated region
              $region44: #{conv_local_2d.1} parent=31 // pred_check
                _
              $region45: #{conv_local_2d.1} parent=31 // pred_check_branch
                %200 = sbr.rel (0) target = $region47
              $region46: #{conv_local_2d.1} parent=31 // pred_region
                loop: start=0, step=1, limit=1
                $region48: #{conv_local_2d.1} parent=46 // loop_pre_header
                  _
                $region49: #{conv_local_2d.1} parent=46 // loop_header
                  %s202 = sphi 0, %s206
                  %p203 = scmp.ge.s32.totalorder %s202, 1
                  %s207 = sphi %s163, %s163
                  %s208 = sphi %s161, %s161
                $region50: #{conv_local_2d.1} parent=46 // loop_header_branch
                  %205 = sbr.rel (%p203) target = $region54
                $region51: #{conv_local_2d.1} parent=46 // loop_body
                  _
                $region52: #{conv_local_2d.1} parent=46 // loop_footer
                  %s206 = sadd.s32 1, %s202
                $region53: #{conv_local_2d.1} parent=46 // loop_footer_branch
                  %201 = sbr.rel target = $region49
                $region54: #{conv_local_2d.1} parent=46 // loop_exit
                  _
                loop: start=0, step=1, limit=1
                $region55: #{conv_local_2d.1} parent=46 // loop_pre_header
                  _
                $region56: #{conv_local_2d.1} parent=46 // loop_header
                  %s211 = sphi 0, %s215
                  %p212 = scmp.ge.s32.totalorder %s211, 1
                  %s216 = sphi %s163, %s163
                  %s217 = sphi %s161, %s161
                $region57: #{conv_local_2d.1} parent=46 // loop_header_branch
                  %214 = sbr.rel (%p212) target = $region61
                $region58: #{conv_local_2d.1} parent=46 // loop_body
                  %v218 = vld [vmem:[%s216] sm:$0xf]
                  %219 = vst [vmem:[%s217] sm:$0xf] %v218
                  %v220 = vld [vmem:[%s216 + $0x8] sm:$0xf]
                  %221 = vst [vmem:[%s217 + $0x4] sm:$0xf] %v220
                  %v222 = vld [vmem:[%s216 + $0x10] sm:$0xf]
                  %223 = vst [vmem:[%s217 + $0x8] sm:$0xf] %v222
                  %v224 = vld [vmem:[%s216 + $0x18] sm:$0xf]
                  %225 = vst [vmem:[%s217 + $0xc] sm:$0xf] %v224
                  %v226 = vld [vmem:[%s216 + $0x20] sm:$0xf]
                  %227 = vst [vmem:[%s217 + $0x10] sm:$0xf] %v226
                  %v228 = vld [vmem:[%s216 + $0x28] sm:$0xf]
                  %229 = vst [vmem:[%s217 + $0x14] sm:$0xf] %v228
                  %v230 = vld [vmem:[%s216 + $0x30] sm:$0xf]
                  %231 = vst [vmem:[%s217 + $0x18] sm:$0xf] %v230
                  %v232 = vld [vmem:[%s216 + $0x38] sm:$0xf]
                  %233 = vst [vmem:[%s217 + $0x1c] sm:$0xf] %v232
                  %v234 = vld [vmem:[%s216 + $0x40] sm:$0xf]
                  %235 = vst [vmem:[%s217 + $0x20] sm:$0xf] %v234
                  %v236 = vld [vmem:[%s216 + $0x48] sm:$0xf]
                  %237 = vst [vmem:[%s217 + $0x24] sm:$0xf] %v236
                $region59: #{conv_local_2d.1} parent=46 // loop_footer
                  %s215 = sadd.s32 1, %s211
                $region60: #{conv_local_2d.1} parent=46 // loop_footer_branch
                  %210 = sbr.rel target = $region56
                $region61: #{conv_local_2d.1} parent=46 // loop_exit
                  _
              $region47: #{conv_local_2d.1} parent=31 // pred_fallthru
                _
            $region32: #{conv_local_2d.1} parent=27 // pred_fallthru
              _
            // Predicated region
            $region33: #{conv_local_2d.1} parent=27 // pred_check
              _
            $region34: #{conv_local_2d.1} parent=27 // pred_check_branch
              %169 = sbr.rel (0) target = $region36
            $region35: #{conv_local_2d.1} parent=27 // pred_region
              loop: start=0, step=1, limit=1
              $region37: #{conv_local_2d.1} parent=35 // loop_pre_header
                _
              $region38: #{conv_local_2d.1} parent=35 // loop_header
                %s172 = sphi 0, %s176
                %p173 = scmp.ge.s32.totalorder %s172, 1
                %s177 = sphi %s163, %s163
                %s178 = sphi %s161, %s161
              $region39: #{conv_local_2d.1} parent=35 // loop_header_branch
                %175 = sbr.rel (%p173) target = $region43
              $region40: #{conv_local_2d.1} parent=35 // loop_body
                %v179 = vld [vmem:[%s177] sm:$0xf]
                %180 = vst [vmem:[%s178] sm:$0xf] %v179
                %v181 = vld [vmem:[%s177 + $0x8] sm:$0xf]
                %182 = vst [vmem:[%s178 + $0x4] sm:$0xf] %v181
                %v183 = vld [vmem:[%s177 + $0x10] sm:$0xf]
                %184 = vst [vmem:[%s178 + $0x8] sm:$0xf] %v183
                %v185 = vld [vmem:[%s177 + $0x18] sm:$0xf]
                %186 = vst [vmem:[%s178 + $0xc] sm:$0xf] %v185
                %v187 = vld [vmem:[%s177 + $0x20] sm:$0xf]
                %188 = vst [vmem:[%s178 + $0x10] sm:$0xf] %v187
                %v189 = vld [vmem:[%s177 + $0x28] sm:$0xf]
                %190 = vst [vmem:[%s178 + $0x14] sm:$0xf] %v189
                %v191 = vld [vmem:[%s177 + $0x30] sm:$0xf]
                %192 = vst [vmem:[%s178 + $0x18] sm:$0xf] %v191
                %v193 = vld [vmem:[%s177 + $0x38] sm:$0xf]
                %194 = vst [vmem:[%s178 + $0x1c] sm:$0xf] %v193
                %v195 = vld [vmem:[%s177 + $0x40] sm:$0xf]
                %196 = vst [vmem:[%s178 + $0x20] sm:$0xf] %v195
                %v197 = vld [vmem:[%s177 + $0x48] sm:$0xf]
                %198 = vst [vmem:[%s178 + $0x24] sm:$0xf] %v197
              $region41: #{conv_local_2d.1} parent=35 // loop_footer
                %s176 = sadd.s32 1, %s172
              $region42: #{conv_local_2d.1} parent=35 // loop_footer_branch
                %171 = sbr.rel target = $region38
              $region43: #{conv_local_2d.1} parent=35 // loop_exit
                _
            $region36: #{conv_local_2d.1} parent=27 // pred_fallthru
              _
          $region28: #{conv_local_2d.1} parent=23 // pred_fallthru
            _
          %238 = vnop
        $region24: #{conv_local_2d.1} parent=19 // pred_fallthru
          _
        // Predicated region
        $region62: #{conv_local_2d.1} parent=19 // pred_check
          %p239 = pneg %p69
        $region63: #{conv_local_2d.1} parent=19 // pred_check_branch
          %241 = sbr.rel (%p239) target = $region65
        $region64: #{conv_local_2d.1} parent=19 // pred_region
          %s242 = sand.u32 %s59, 1
          %s243 = sand.u32 %s59, 1
          %s244 = smul.addr %s243, 160
          %s245 = scalar_lea.vmem [#allocation3], %s244
          %s246 = smul.u32 8, %s17
          %s247 = smul.addr %s246, 10
          %s248 = sadd.s32 %s16, %s247
          %s249 = smul.addr %s248, 4
          %s250 = scalar_lea.vmem %s1, %s249
          // Predicated region
          $region66: #{conv_local_2d.1} parent=64 // pred_check
            _
          $region67: #{conv_local_2d.1} parent=64 // pred_check_branch
            %252 = sbr.rel (0) target = $region69
          $region68: #{conv_local_2d.1} parent=64 // pred_region
            // Predicated region
            $region70: #{conv_local_2d.1} parent=68 // pred_check
              _
            $region71: #{conv_local_2d.1} parent=68 // pred_check_branch
              %254 = sbr.rel target = $region73
            $region72: #{conv_local_2d.1} parent=68 // pred_region
              // Predicated region
              $region85: #{conv_local_2d.1} parent=72 // pred_check
                _
              $region86: #{conv_local_2d.1} parent=72 // pred_check_branch
                %347 = sbr.rel (0) target = $region88
              $region87: #{conv_local_2d.1} parent=72 // pred_region
                loop: start=0, step=1, limit=1
                $region89: #{conv_local_2d.1} parent=87 // loop_pre_header
                  _
                $region90: #{conv_local_2d.1} parent=87 // loop_header
                  %s349 = sphi 0, %s353
                  %p350 = scmp.ge.s32.totalorder %s349, 1
                  %s354 = sphi %s250, %s250
                  %s355 = sphi %s245, %s245
                $region91: #{conv_local_2d.1} parent=87 // loop_header_branch
                  %352 = sbr.rel (%p350) target = $region95
                $region92: #{conv_local_2d.1} parent=87 // loop_body
                  _
                $region93: #{conv_local_2d.1} parent=87 // loop_footer
                  %s353 = sadd.s32 1, %s349
                $region94: #{conv_local_2d.1} parent=87 // loop_footer_branch
                  %348 = sbr.rel target = $region90
                $region95: #{conv_local_2d.1} parent=87 // loop_exit
                  _
                loop: start=0, step=1, limit=1
                $region96: #{conv_local_2d.1} parent=87 // loop_pre_header
                  _
                $region97: #{conv_local_2d.1} parent=87 // loop_header
                  %s358 = sphi 0, %s362
                  %p359 = scmp.ge.s32.totalorder %s358, 1
                  %s363 = sphi %s250, %s250
                  %s364 = sphi %s245, %s245
                $region98: #{conv_local_2d.1} parent=87 // loop_header_branch
                  %361 = sbr.rel (%p359) target = $region102
                $region99: #{conv_local_2d.1} parent=87 // loop_body
                  %v365 = vld [vmem:[%s363] sm:$0xf]
                  %366 = vst [vmem:[%s364] sm:$0xf] %v365
                  %v367 = vld [vmem:[%s363 + $0x8] sm:$0xf]
                  %368 = vst [vmem:[%s364 + $0x4] sm:$0xf] %v367
                  %v369 = vld [vmem:[%s363 + $0x10] sm:$0xf]
                  %370 = vst [vmem:[%s364 + $0x8] sm:$0xf] %v369
                  %v371 = vld [vmem:[%s363 + $0x18] sm:$0xf]
                  %372 = vst [vmem:[%s364 + $0xc] sm:$0xf] %v371
                  %v373 = vld [vmem:[%s363 + $0x20] sm:$0xf]
                  %374 = vst [vmem:[%s364 + $0x10] sm:$0xf] %v373
                  %v375 = vld [vmem:[%s363 + $0x28] sm:$0xf]
                  %376 = vst [vmem:[%s364 + $0x14] sm:$0xf] %v375
                  %v377 = vld [vmem:[%s363 + $0x30] sm:$0xf]
                  %378 = vst [vmem:[%s364 + $0x18] sm:$0xf] %v377
                  %v379 = vld [vmem:[%s363 + $0x38] sm:$0xf]
                  %380 = vst [vmem:[%s364 + $0x1c] sm:$0xf] %v379
                  %v381 = vld [vmem:[%s363 + $0x40] sm:$0xf]
                  %382 = vst [vmem:[%s364 + $0x20] sm:$0xf] %v381
                  %v383 = vld [vmem:[%s363 + $0x48] sm:$0xf]
                  %384 = vst [vmem:[%s364 + $0x24] sm:$0xf] %v383
                  %v385 = vld [vmem:[%s363 + $0x50] sm:$0xf]
                  %386 = vst [vmem:[%s364 + $0x28] sm:$0xf] %v385
                  %v387 = vld [vmem:[%s363 + $0x58] sm:$0xf]
                  %388 = vst [vmem:[%s364 + $0x2c] sm:$0xf] %v387
                  %v389 = vld [vmem:[%s363 + $0x60] sm:$0xf]
                  %390 = vst [vmem:[%s364 + $0x30] sm:$0xf] %v389
                  %v391 = vld [vmem:[%s363 + $0x68] sm:$0xf]
                  %392 = vst [vmem:[%s364 + $0x34] sm:$0xf] %v391
                  %v393 = vld [vmem:[%s363 + $0x70] sm:$0xf]
                  %394 = vst [vmem:[%s364 + $0x38] sm:$0xf] %v393
                  %v395 = vld [vmem:[%s363 + $0x78] sm:$0xf]
                  %396 = vst [vmem:[%s364 + $0x3c] sm:$0xf] %v395
                  %v397 = vld [vmem:[%s363 + $0x80] sm:$0xf]
                  %398 = vst [vmem:[%s364 + $0x40] sm:$0xf] %v397
                  %v399 = vld [vmem:[%s363 + $0x88] sm:$0xf]
                  %400 = vst [vmem:[%s364 + $0x44] sm:$0xf] %v399
                  %v401 = vld [vmem:[%s363 + $0x90] sm:$0xf]
                  %402 = vst [vmem:[%s364 + $0x48] sm:$0xf] %v401
                  %v403 = vld [vmem:[%s363 + $0x98] sm:$0xf]
                  %404 = vst [vmem:[%s364 + $0x4c] sm:$0xf] %v403
                  %v405 = vld [vmem:[%s363 + $0xa0] sm:$0xf]
                  %406 = vst [vmem:[%s364 + $0x50] sm:$0xf] %v405
                  %v407 = vld [vmem:[%s363 + $0xa8] sm:$0xf]
                  %408 = vst [vmem:[%s364 + $0x54] sm:$0xf] %v407
                  %v409 = vld [vmem:[%s363 + $0xb0] sm:$0xf]
                  %410 = vst [vmem:[%s364 + $0x58] sm:$0xf] %v409
                  %v411 = vld [vmem:[%s363 + $0xb8] sm:$0xf]
                  %412 = vst [vmem:[%s364 + $0x5c] sm:$0xf] %v411
                  %v413 = vld [vmem:[%s363 + $0xc0] sm:$0xf]
                  %414 = vst [vmem:[%s364 + $0x60] sm:$0xf] %v413
                  %v415 = vld [vmem:[%s363 + $0xc8] sm:$0xf]
                  %416 = vst [vmem:[%s364 + $0x64] sm:$0xf] %v415
                  %v417 = vld [vmem:[%s363 + $0xd0] sm:$0xf]
                  %418 = vst [vmem:[%s364 + $0x68] sm:$0xf] %v417
                  %v419 = vld [vmem:[%s363 + $0xd8] sm:$0xf]
                  %420 = vst [vmem:[%s364 + $0x6c] sm:$0xf] %v419
                  %v421 = vld [vmem:[%s363 + $0xe0] sm:$0xf]
                  %422 = vst [vmem:[%s364 + $0x70] sm:$0xf] %v421
                  %v423 = vld [vmem:[%s363 + $0xe8] sm:$0xf]
                  %424 = vst [vmem:[%s364 + $0x74] sm:$0xf] %v423
                  %v425 = vld [vmem:[%s363 + $0xf0] sm:$0xf]
                  %426 = vst [vmem:[%s364 + $0x78] sm:$0xf] %v425
                  %v427 = vld [vmem:[%s363 + $0xf8] sm:$0xf]
                  %428 = vst [vmem:[%s364 + $0x7c] sm:$0xf] %v427
                  %v429 = vld [vmem:[%s363 + $0x100] sm:$0xf]
                  %430 = vst [vmem:[%s364 + $0x80] sm:$0xf] %v429
                  %v431 = vld [vmem:[%s363 + $0x108] sm:$0xf]
                  %432 = vst [vmem:[%s364 + $0x84] sm:$0xf] %v431
                  %v433 = vld [vmem:[%s363 + $0x110] sm:$0xf]
                  %434 = vst [vmem:[%s364 + $0x88] sm:$0xf] %v433
                  %v435 = vld [vmem:[%s363 + $0x118] sm:$0xf]
                  %436 = vst [vmem:[%s364 + $0x8c] sm:$0xf] %v435
                  %v437 = vld [vmem:[%s363 + $0x120] sm:$0xf]
                  %438 = vst [vmem:[%s364 + $0x90] sm:$0xf] %v437
                  %v439 = vld [vmem:[%s363 + $0x128] sm:$0xf]
                  %440 = vst [vmem:[%s364 + $0x94] sm:$0xf] %v439
                  %v441 = vld [vmem:[%s363 + $0x130] sm:$0xf]
                  %442 = vst [vmem:[%s364 + $0x98] sm:$0xf] %v441
                  %v443 = vld [vmem:[%s363 + $0x138] sm:$0xf]
                  %444 = vst [vmem:[%s364 + $0x9c] sm:$0xf] %v443
                $region100: #{conv_local_2d.1} parent=87 // loop_footer
                  %s362 = sadd.s32 1, %s358
                $region101: #{conv_local_2d.1} parent=87 // loop_footer_branch
                  %357 = sbr.rel target = $region97
                $region102: #{conv_local_2d.1} parent=87 // loop_exit
                  _
              $region88: #{conv_local_2d.1} parent=72 // pred_fallthru
                _
            $region73: #{conv_local_2d.1} parent=68 // pred_fallthru
              _
            // Predicated region
            $region74: #{conv_local_2d.1} parent=68 // pred_check
              _
            $region75: #{conv_local_2d.1} parent=68 // pred_check_branch
              %256 = sbr.rel (0) target = $region77
            $region76: #{conv_local_2d.1} parent=68 // pred_region
              loop: start=0, step=1, limit=1
              $region78: #{conv_local_2d.1} parent=76 // loop_pre_header
                _
              $region79: #{conv_local_2d.1} parent=76 // loop_header
                %s259 = sphi 0, %s263
                %p260 = scmp.ge.s32.totalorder %s259, 1
                %s264 = sphi %s250, %s250
                %s265 = sphi %s245, %s245
              $region80: #{conv_local_2d.1} parent=76 // loop_header_branch
                %262 = sbr.rel (%p260) target = $region84
              $region81: #{conv_local_2d.1} parent=76 // loop_body
                %v266 = vld [vmem:[%s264] sm:$0xf]
                %267 = vst [vmem:[%s265] sm:$0xf] %v266
                %v268 = vld [vmem:[%s264 + $0x8] sm:$0xf]
                %269 = vst [vmem:[%s265 + $0x4] sm:$0xf] %v268
                %v270 = vld [vmem:[%s264 + $0x10] sm:$0xf]
                %271 = vst [vmem:[%s265 + $0x8] sm:$0xf] %v270
                %v272 = vld [vmem:[%s264 + $0x18] sm:$0xf]
                %273 = vst [vmem:[%s265 + $0xc] sm:$0xf] %v272
                %v274 = vld [vmem:[%s264 + $0x20] sm:$0xf]
                %275 = vst [vmem:[%s265 + $0x10] sm:$0xf] %v274
                %v276 = vld [vmem:[%s264 + $0x28] sm:$0xf]
                %277 = vst [vmem:[%s265 + $0x14] sm:$0xf] %v276
                %v278 = vld [vmem:[%s264 + $0x30] sm:$0xf]
                %279 = vst [vmem:[%s265 + $0x18] sm:$0xf] %v278
                %v280 = vld [vmem:[%s264 + $0x38] sm:$0xf]
                %281 = vst [vmem:[%s265 + $0x1c] sm:$0xf] %v280
                %v282 = vld [vmem:[%s264 + $0x40] sm:$0xf]
                %283 = vst [vmem:[%s265 + $0x20] sm:$0xf] %v282
                %v284 = vld [vmem:[%s264 + $0x48] sm:$0xf]
                %285 = vst [vmem:[%s265 + $0x24] sm:$0xf] %v284
                %v286 = vld [vmem:[%s264 + $0x50] sm:$0xf]
                %287 = vst [vmem:[%s265 + $0x28] sm:$0xf] %v286
                %v288 = vld [vmem:[%s264 + $0x58] sm:$0xf]
                %289 = vst [vmem:[%s265 + $0x2c] sm:$0xf] %v288
                %v290 = vld [vmem:[%s264 + $0x60] sm:$0xf]
                %291 = vst [vmem:[%s265 + $0x30] sm:$0xf] %v290
                %v292 = vld [vmem:[%s264 + $0x68] sm:$0xf]
                %293 = vst [vmem:[%s265 + $0x34] sm:$0xf] %v292
                %v294 = vld [vmem:[%s264 + $0x70] sm:$0xf]
                %295 = vst [vmem:[%s265 + $0x38] sm:$0xf] %v294
                %v296 = vld [vmem:[%s264 + $0x78] sm:$0xf]
                %297 = vst [vmem:[%s265 + $0x3c] sm:$0xf] %v296
                %v298 = vld [vmem:[%s264 + $0x80] sm:$0xf]
                %299 = vst [vmem:[%s265 + $0x40] sm:$0xf] %v298
                %v300 = vld [vmem:[%s264 + $0x88] sm:$0xf]
                %301 = vst [vmem:[%s265 + $0x44] sm:$0xf] %v300
                %v302 = vld [vmem:[%s264 + $0x90] sm:$0xf]
                %303 = vst [vmem:[%s265 + $0x48] sm:$0xf] %v302
                %v304 = vld [vmem:[%s264 + $0x98] sm:$0xf]
                %305 = vst [vmem:[%s265 + $0x4c] sm:$0xf] %v304
                %v306 = vld [vmem:[%s264 + $0xa0] sm:$0xf]
                %307 = vst [vmem:[%s265 + $0x50] sm:$0xf] %v306
                %v308 = vld [vmem:[%s264 + $0xa8] sm:$0xf]
                %309 = vst [vmem:[%s265 + $0x54] sm:$0xf] %v308
                %v310 = vld [vmem:[%s264 + $0xb0] sm:$0xf]
                %311 = vst [vmem:[%s265 + $0x58] sm:$0xf] %v310
                %v312 = vld [vmem:[%s264 + $0xb8] sm:$0xf]
                %313 = vst [vmem:[%s265 + $0x5c] sm:$0xf] %v312
                %v314 = vld [vmem:[%s264 + $0xc0] sm:$0xf]
                %315 = vst [vmem:[%s265 + $0x60] sm:$0xf] %v314
                %v316 = vld [vmem:[%s264 + $0xc8] sm:$0xf]
                %317 = vst [vmem:[%s265 + $0x64] sm:$0xf] %v316
                %v318 = vld [vmem:[%s264 + $0xd0] sm:$0xf]
                %319 = vst [vmem:[%s265 + $0x68] sm:$0xf] %v318
                %v320 = vld [vmem:[%s264 + $0xd8] sm:$0xf]
                %321 = vst [vmem:[%s265 + $0x6c] sm:$0xf] %v320
                %v322 = vld [vmem:[%s264 + $0xe0] sm:$0xf]
                %323 = vst [vmem:[%s265 + $0x70] sm:$0xf] %v322
                %v324 = vld [vmem:[%s264 + $0xe8] sm:$0xf]
                %325 = vst [vmem:[%s265 + $0x74] sm:$0xf] %v324
                %v326 = vld [vmem:[%s264 + $0xf0] sm:$0xf]
                %327 = vst [vmem:[%s265 + $0x78] sm:$0xf] %v326
                %v328 = vld [vmem:[%s264 + $0xf8] sm:$0xf]
                %329 = vst [vmem:[%s265 + $0x7c] sm:$0xf] %v328
                %v330 = vld [vmem:[%s264 + $0x100] sm:$0xf]
                %331 = vst [vmem:[%s265 + $0x80] sm:$0xf] %v330
                %v332 = vld [vmem:[%s264 + $0x108] sm:$0xf]
                %333 = vst [vmem:[%s265 + $0x84] sm:$0xf] %v332
                %v334 = vld [vmem:[%s264 + $0x110] sm:$0xf]
                %335 = vst [vmem:[%s265 + $0x88] sm:$0xf] %v334
                %v336 = vld [vmem:[%s264 + $0x118] sm:$0xf]
                %337 = vst [vmem:[%s265 + $0x8c] sm:$0xf] %v336
                %v338 = vld [vmem:[%s264 + $0x120] sm:$0xf]
                %339 = vst [vmem:[%s265 + $0x90] sm:$0xf] %v338
                %v340 = vld [vmem:[%s264 + $0x128] sm:$0xf]
                %341 = vst [vmem:[%s265 + $0x94] sm:$0xf] %v340
                %v342 = vld [vmem:[%s264 + $0x130] sm:$0xf]
                %343 = vst [vmem:[%s265 + $0x98] sm:$0xf] %v342
                %v344 = vld [vmem:[%s264 + $0x138] sm:$0xf]
                %345 = vst [vmem:[%s265 + $0x9c] sm:$0xf] %v344
              $region82: #{conv_local_2d.1} parent=76 // loop_footer
                %s263 = sadd.s32 1, %s259
              $region83: #{conv_local_2d.1} parent=76 // loop_footer_branch
                %258 = sbr.rel target = $region79
              $region84: #{conv_local_2d.1} parent=76 // loop_exit
                _
            $region77: #{conv_local_2d.1} parent=68 // pred_fallthru
              _
          $region69: #{conv_local_2d.1} parent=64 // pred_fallthru
            _
          %445 = vnop
        $region65: #{conv_local_2d.1} parent=19 // pred_fallthru
          _
      $region20: #{conv_local_2d.1} parent=5 // pred_fallthru
        _
      %p446 = scmp.le.s32.totalorder 1, %s9
      %p447 = scmp.lt.s32.totalorder %s9, 3
      %p448 = pnand %p446, %p447
      %p449 = pneg %p448
      // Predicated region
      $region103: #{conv_local_2d.1} parent=5 // pred_check
        _
      $region104: #{conv_local_2d.1} parent=5 // pred_check_branch
        %451 = sbr.rel (%p448) target = $region106
      $region105: #{conv_local_2d.1} parent=5 // pred_region
        %s452 = ssub.s32 %s9, 1
        %s453 = sand.u32 %s34, 1
        %s454 = sand.u32 %s34, 1
        %s455 = smul.addr %s454, 40
        %s456 = scalar_lea.vmem [#allocation2], %s455
        // Predicated region
        $region107: #{conv_local_2d.1} parent=105 // pred_check
          %p457 = pneg %p47
        $region108: #{conv_local_2d.1} parent=105 // pred_check_branch
          %459 = sbr.rel (%p457) target = $region110
        $region109: #{conv_local_2d.1} parent=105 // pred_region
          _
        $region110: #{conv_local_2d.1} parent=105 // pred_fallthru
          _
        %s460 = sand.u32 %s62, 1
        %s461 = sand.u32 %s62, 1
        %s462 = smul.addr %s461, 160
        %s463 = scalar_lea.vmem [#allocation3], %s462
        // Predicated region
        $region111: #{conv_local_2d.1} parent=105 // pred_check
          %p464 = pneg %p75
        $region112: #{conv_local_2d.1} parent=105 // pred_check_branch
          %466 = sbr.rel (%p464) target = $region114
        $region113: #{conv_local_2d.1} parent=105 // pred_region
          _
        $region114: #{conv_local_2d.1} parent=105 // pred_fallthru
          _
        %s467 = sand.u32 %s34, 1
        %s468 = sand.u32 %s34, 1
        %s469 = smul.addr %s468, 40
        %s470 = scalar_lea.vmem [#allocation2], %s469
        %p471 = pneg %p47
        %p472 = pneg %p44
        %s473 = sand.u32 %s62, 1
        %s474 = sand.u32 %s62, 1
        %s475 = smul.addr %s474, 160
        %s476 = scalar_lea.vmem [#allocation3], %s475
        %p477 = pneg %p75
        %p478 = pneg %p72
        %p479 = scmp.lt.s32.totalorder %s19, 0
        %s480 = scalar_select %p479, %s19, 0
        %s481 = smul.addr %s480, 8
        %s482 = scalar_lea.vmem %s2, %s481
        %p483 = pneg %p101
        %p484 = pneg %p98
        %p485 = pneg %p129
        %p486 = pneg %p126
        %s487 = sand.u32 %s116, 1
        %s488 = sand.u32 %s116, 1
        %s489 = smul.addr %s488, 16
        %s490 = scalar_lea.vmem [#allocation4], %s489
        %s491 = smul.u32 8, %s19
        %p492 = scmp.lt.s32.totalorder %s19, 0
        %s493 = scalar_select %p492, %s19, 0
        %s494 = smul.addr %s493, 8
        %s495 = scalar_lea.vmem %s2, %s494
        %v496 = vld [vmem:[%s456] sm:$0xf]
        %v497 = vld [vmem:[%s456 + $0x14] sm:$0xf]
        %v498 = vunpack.c.l.bf16 %v496
        %v499 = vunpack.c.l.bf16 %v497
        %v500 = vld [vmem:[%s463] sm:$0xf]
        %v501 = vld [vmem:[%s463 + $0x14] sm:$0xf]
        %v502 = vld [vmem:[%s463 + $0x28] sm:$0xf]
        %v503 = vld [vmem:[%s463 + $0x3c] sm:$0xf]
        %v504 = vld [vmem:[%s463 + $0x50] sm:$0xf]
        %v505 = vld [vmem:[%s463 + $0x64] sm:$0xf]
        %v506 = vld [vmem:[%s463 + $0x78] sm:$0xf]
        %v507 = vld [vmem:[%s463 + $0x8c] sm:$0xf]
        %v508 = vunpack.c.l.bf16 %v500
        %v509 = vunpack.c.l.bf16 %v501
        %v510 = vunpack.c.l.bf16 %v502
        %v511 = vunpack.c.l.bf16 %v503
        %v512 = vunpack.c.l.bf16 %v504
        %v513 = vunpack.c.l.bf16 %v505
        %v514 = vunpack.c.l.bf16 %v506
        %v515 = vunpack.c.l.bf16 %v507
        %v516 = vlaneseq
        %v517 = vshrl.u32 %v516, 7
        %v518 = vsub.s32 0, %v517
        %v519 = vrot.slane %v498, %v518
        %v520 = vlaneseq
        %v521 = vshrl.u32 %v520, 7
        %v522 = vsub.s32 0, %v521
        %v523 = vrot.slane %v499, %v522
        %v532 = vrot.slane %v509, 7
        %vm533 = vcmask 1041409
        %v534 = vsel %vm533, %v532, %v508
        %v535 = vrot.slane %v510, 6
        %vm536 = vcmask 1042434
        %v537 = vsel %vm536, %v535, %v534
        %v538 = vrot.slane %v511, 5
        %vm539 = vcmask 1043459
        %v540 = vsel %vm539, %v538, %v537
        %v541 = vrot.slane %v512, 4
        %vm542 = vcmask 1044484
        %v543 = vsel %vm542, %v541, %v540
        %v544 = vrot.slane %v513, 3
        %vm545 = vcmask 1045509
        %v546 = vsel %vm545, %v544, %v543
        %v547 = vrot.slane %v514, 2
        %vm548 = vcmask 1046534
        %v549 = vsel %vm548, %v547, %v546
        %v550 = vrot.slane %v515, 1
        %vm551 = vcmask 1047559
        %v552 = vsel %vm551, %v550, %v549
        %v554 = vmul.f32 %v519, %v552
        %v555 = vmul.f32 %v523, %v552
        %v556 = vadd.f32 %v554, 0.0
        %v557 = vadd.f32 %v555, 0.0
        %v558 = vlaneseq
        %v559 = vshrl.u32 %v558, 7
        %v560 = vsub.s32 1, %v559
        %v561 = vrot.slane %v498, %v560
        %v562 = vlaneseq
        %v563 = vshrl.u32 %v562, 7
        %v564 = vsub.s32 1, %v563
        %v565 = vrot.slane %v499, %v564
        %v566 = vrot.slane %v508, 1
        %v567 = vsel %vm533, %v509, %v566
        %v568 = vrot.slane %v510, 7
        %v569 = vsel %vm536, %v568, %v567
        %v570 = vrot.slane %v511, 6
        %v571 = vsel %vm539, %v570, %v569
        %v572 = vrot.slane %v512, 5
        %v573 = vsel %vm542, %v572, %v571
        %v574 = vrot.slane %v513, 4
        %v575 = vsel %vm545, %v574, %v573
        %v576 = vrot.slane %v514, 3
        %v577 = vsel %vm548, %v576, %v575
        %v578 = vrot.slane %v515, 2
        %v579 = vsel %vm551, %v578, %v577
        %v581 = vmul.f32 %v561, %v579
        %v582 = vmul.f32 %v565, %v579
        %v583 = vadd.f32 %v556, %v581
        %v584 = vadd.f32 %v557, %v582
        %v585 = vlaneseq
        %v586 = vshrl.u32 %v585, 7
        %v587 = vsub.s32 2, %v586
        %v588 = vrot.slane %v498, %v587
        %v589 = vlaneseq
        %v590 = vshrl.u32 %v589, 7
        %v591 = vsub.s32 2, %v590
        %v592 = vrot.slane %v499, %v591
        %v593 = vrot.slane %v508, 2
        %v594 = vrot.slane %v509, 1
        %v595 = vsel %vm533, %v594, %v593
        %v596 = vsel %vm536, %v510, %v595
        %v597 = vrot.slane %v511, 7
        %v598 = vsel %vm539, %v597, %v596
        %v599 = vrot.slane %v512, 6
        %v600 = vsel %vm542, %v599, %v598
        %v601 = vrot.slane %v513, 5
        %v602 = vsel %vm545, %v601, %v600
        %v603 = vrot.slane %v514, 4
        %v604 = vsel %vm548, %v603, %v602
        %v605 = vrot.slane %v515, 3
        %v606 = vsel %vm551, %v605, %v604
        %v608 = vmul.f32 %v588, %v606
        %v609 = vmul.f32 %v592, %v606
        %v610 = vadd.f32 %v583, %v608
        %v611 = vadd.f32 %v584, %v609
        %v612 = vlaneseq
        %v613 = vshrl.u32 %v612, 7
        %v614 = vsub.s32 3, %v613
        %v615 = vrot.slane %v498, %v614
        %v616 = vlaneseq
        %v617 = vshrl.u32 %v616, 7
        %v618 = vsub.s32 3, %v617
        %v619 = vrot.slane %v499, %v618
        %v620 = vrot.slane %v508, 3
        %v621 = vrot.slane %v509, 2
        %v622 = vsel %vm533, %v621, %v620
        %v623 = vrot.slane %v510, 1
        %v624 = vsel %vm536, %v623, %v622
        %v625 = vsel %vm539, %v511, %v624
        %v626 = vrot.slane %v512, 7
        %v627 = vsel %vm542, %v626, %v625
        %v628 = vrot.slane %v513, 6
        %v629 = vsel %vm545, %v628, %v627
        %v630 = vrot.slane %v514, 5
        %v631 = vsel %vm548, %v630, %v629
        %v632 = vrot.slane %v515, 4
        %v633 = vsel %vm551, %v632, %v631
        %v635 = vmul.f32 %v615, %v633
        %v636 = vmul.f32 %v619, %v633
        %v637 = vadd.f32 %v610, %v635
        %v638 = vadd.f32 %v611, %v636
        %v639 = vlaneseq
        %v640 = vshrl.u32 %v639, 7
        %v641 = vsub.s32 4, %v640
        %v642 = vrot.slane %v498, %v641
        %v643 = vlaneseq
        %v644 = vshrl.u32 %v643, 7
        %v645 = vsub.s32 4, %v644
        %v646 = vrot.slane %v499, %v645
        %v647 = vrot.slane %v508, 4
        %v648 = vrot.slane %v509, 3
        %v649 = vsel %vm533, %v648, %v647
        %v650 = vrot.slane %v510, 2
        %v651 = vsel %vm536, %v650, %v649
        %v652 = vrot.slane %v511, 1
        %v653 = vsel %vm539, %v652, %v651
        %v654 = vsel %vm542, %v512, %v653
        %v655 = vrot.slane %v513, 7
        %v656 = vsel %vm545, %v655, %v654
        %v657 = vrot.slane %v514, 6
        %v658 = vsel %vm548, %v657, %v656
        %v659 = vrot.slane %v515, 5
        %v660 = vsel %vm551, %v659, %v658
        %v662 = vmul.f32 %v642, %v660
        %v663 = vmul.f32 %v646, %v660
        %v664 = vadd.f32 %v637, %v662
        %v665 = vadd.f32 %v638, %v663
        %v666 = vlaneseq
        %v667 = vshrl.u32 %v666, 7
        %v668 = vsub.s32 5, %v667
        %v669 = vrot.slane %v498, %v668
        %v670 = vlaneseq
        %v671 = vshrl.u32 %v670, 7
        %v672 = vsub.s32 5, %v671
        %v673 = vrot.slane %v499, %v672
        %v674 = vrot.slane %v508, 5
        %v675 = vrot.slane %v509, 4
        %v676 = vsel %vm533, %v675, %v674
        %v677 = vrot.slane %v510, 3
        %v678 = vsel %vm536, %v677, %v676
        %v679 = vrot.slane %v511, 2
        %v680 = vsel %vm539, %v679, %v678
        %v681 = vrot.slane %v512, 1
        %v682 = vsel %vm542, %v681, %v680
        %v683 = vsel %vm545, %v513, %v682
        %v684 = vrot.slane %v514, 7
        %v685 = vsel %vm548, %v684, %v683
        %v686 = vrot.slane %v515, 6
        %v687 = vsel %vm551, %v686, %v685
        %v689 = vmul.f32 %v669, %v687
        %v690 = vmul.f32 %v673, %v687
        %v691 = vadd.f32 %v664, %v689
        %v692 = vadd.f32 %v665, %v690
        %v693 = vlaneseq
        %v694 = vshrl.u32 %v693, 7
        %v695 = vsub.s32 6, %v694
        %v696 = vrot.slane %v498, %v695
        %v697 = vlaneseq
        %v698 = vshrl.u32 %v697, 7
        %v699 = vsub.s32 6, %v698
        %v700 = vrot.slane %v499, %v699
        %v701 = vrot.slane %v508, 6
        %v702 = vrot.slane %v509, 5
        %v703 = vsel %vm533, %v702, %v701
        %v704 = vrot.slane %v510, 4
        %v705 = vsel %vm536, %v704, %v703
        %v706 = vrot.slane %v511, 3
        %v707 = vsel %vm539, %v706, %v705
        %v708 = vrot.slane %v512, 2
        %v709 = vsel %vm542, %v708, %v707
        %v710 = vrot.slane %v513, 1
        %v711 = vsel %vm545, %v710, %v709
        %v712 = vsel %vm548, %v514, %v711
        %v713 = vrot.slane %v515, 7
        %v714 = vsel %vm551, %v713, %v712
        %v716 = vmul.f32 %v696, %v714
        %v717 = vmul.f32 %v700, %v714
        %v718 = vadd.f32 %v691, %v716
        %v719 = vadd.f32 %v692, %v717
        %v720 = vlaneseq
        %v721 = vshrl.u32 %v720, 7
        %v722 = vsub.s32 7, %v721
        %v723 = vrot.slane %v498, %v722
        %v724 = vlaneseq
        %v725 = vshrl.u32 %v724, 7
        %v726 = vsub.s32 7, %v725
        %v727 = vrot.slane %v499, %v726
        %v728 = vrot.slane %v508, 7
        %v729 = vrot.slane %v509, 6
        %v730 = vsel %vm533, %v729, %v728
        %v731 = vrot.slane %v510, 5
        %v732 = vsel %vm536, %v731, %v730
        %v733 = vrot.slane %v511, 4
        %v734 = vsel %vm539, %v733, %v732
        %v735 = vrot.slane %v512, 3
        %v736 = vsel %vm542, %v735, %v734
        %v737 = vrot.slane %v513, 2
        %v738 = vsel %vm545, %v737, %v736
        %v739 = vrot.slane %v514, 1
        %v740 = vsel %vm548, %v739, %v738
        %v741 = vsel %vm551, %v515, %v740
        %v743 = vmul.f32 %v723, %v741
        %v744 = vmul.f32 %v727, %v741
        %v745 = vadd.f32 %v718, %v743
        %v746 = vadd.f32 %v719, %v744
        %v747 = vld [vmem:[%s456 + $0x4] sm:$0xf]
        %v748 = vld [vmem:[%s456 + $0x18] sm:$0xf]
        %v749 = vunpack.c.l.bf16 %v747
        %v750 = vunpack.c.l.bf16 %v748
        %v751 = vld [vmem:[%s463 + $0x4] sm:$0xf]
        %v752 = vld [vmem:[%s463 + $0x18] sm:$0xf]
        %v753 = vld [vmem:[%s463 + $0x2c] sm:$0xf]
        %v754 = vld [vmem:[%s463 + $0x40] sm:$0xf]
        %v755 = vld [vmem:[%s463 + $0x54] sm:$0xf]
        %v756 = vld [vmem:[%s463 + $0x68] sm:$0xf]
        %v757 = vld [vmem:[%s463 + $0x7c] sm:$0xf]
        %v758 = vld [vmem:[%s463 + $0x90] sm:$0xf]
        %v759 = vunpack.c.l.bf16 %v751
        %v760 = vunpack.c.l.bf16 %v752
        %v761 = vunpack.c.l.bf16 %v753
        %v762 = vunpack.c.l.bf16 %v754
        %v763 = vunpack.c.l.bf16 %v755
        %v764 = vunpack.c.l.bf16 %v756
        %v765 = vunpack.c.l.bf16 %v757
        %v766 = vunpack.c.l.bf16 %v758
        %v767 = vlaneseq
        %v768 = vshrl.u32 %v767, 7
        %v769 = vsub.s32 0, %v768
        %v770 = vrot.slane %v749, %v769
        %v771 = vlaneseq
        %v772 = vshrl.u32 %v771, 7
        %v773 = vsub.s32 0, %v772
        %v774 = vrot.slane %v750, %v773
        %v783 = vrot.slane %v760, 7
        %v784 = vsel %vm533, %v783, %v759
        %v785 = vrot.slane %v761, 6
        %v786 = vsel %vm536, %v785, %v784
        %v787 = vrot.slane %v762, 5
        %v788 = vsel %vm539, %v787, %v786
        %v789 = vrot.slane %v763, 4
        %v790 = vsel %vm542, %v789, %v788
        %v791 = vrot.slane %v764, 3
        %v792 = vsel %vm545, %v791, %v790
        %v793 = vrot.slane %v765, 2
        %v794 = vsel %vm548, %v793, %v792
        %v795 = vrot.slane %v766, 1
        %v796 = vsel %vm551, %v795, %v794
        %v798 = vmul.f32 %v770, %v796
        %v799 = vmul.f32 %v774, %v796
        %v800 = vadd.f32 %v745, %v798
        %v801 = vadd.f32 %v746, %v799
        %v802 = vlaneseq
        %v803 = vshrl.u32 %v802, 7
        %v804 = vsub.s32 1, %v803
        %v805 = vrot.slane %v749, %v804
        %v806 = vlaneseq
        %v807 = vshrl.u32 %v806, 7
        %v808 = vsub.s32 1, %v807
        %v809 = vrot.slane %v750, %v808
        %v810 = vrot.slane %v759, 1
        %v811 = vsel %vm533, %v760, %v810
        %v812 = vrot.slane %v761, 7
        %v813 = vsel %vm536, %v812, %v811
        %v814 = vrot.slane %v762, 6
        %v815 = vsel %vm539, %v814, %v813
        %v816 = vrot.slane %v763, 5
        %v817 = vsel %vm542, %v816, %v815
        %v818 = vrot.slane %v764, 4
        %v819 = vsel %vm545, %v818, %v817
        %v820 = vrot.slane %v765, 3
        %v821 = vsel %vm548, %v820, %v819
        %v822 = vrot.slane %v766, 2
        %v823 = vsel %vm551, %v822, %v821
        %v825 = vmul.f32 %v805, %v823
        %v826 = vmul.f32 %v809, %v823
        %v827 = vadd.f32 %v800, %v825
        %v828 = vadd.f32 %v801, %v826
        %v829 = vlaneseq
        %v830 = vshrl.u32 %v829, 7
        %v831 = vsub.s32 2, %v830
        %v832 = vrot.slane %v749, %v831
        %v833 = vlaneseq
        %v834 = vshrl.u32 %v833, 7
        %v835 = vsub.s32 2, %v834
        %v836 = vrot.slane %v750, %v835
        %v837 = vrot.slane %v759, 2
        %v838 = vrot.slane %v760, 1
        %v839 = vsel %vm533, %v838, %v837
        %v840 = vsel %vm536, %v761, %v839
        %v841 = vrot.slane %v762, 7
        %v842 = vsel %vm539, %v841, %v840
        %v843 = vrot.slane %v763, 6
        %v844 = vsel %vm542, %v843, %v842
        %v845 = vrot.slane %v764, 5
        %v846 = vsel %vm545, %v845, %v844
        %v847 = vrot.slane %v765, 4
        %v848 = vsel %vm548, %v847, %v846
        %v849 = vrot.slane %v766, 3
        %v850 = vsel %vm551, %v849, %v848
        %v852 = vmul.f32 %v832, %v850
        %v853 = vmul.f32 %v836, %v850
        %v854 = vadd.f32 %v827, %v852
        %v855 = vadd.f32 %v828, %v853
        %v856 = vlaneseq
        %v857 = vshrl.u32 %v856, 7
        %v858 = vsub.s32 3, %v857
        %v859 = vrot.slane %v749, %v858
        %v860 = vlaneseq
        %v861 = vshrl.u32 %v860, 7
        %v862 = vsub.s32 3, %v861
        %v863 = vrot.slane %v750, %v862
        %v864 = vrot.slane %v759, 3
        %v865 = vrot.slane %v760, 2
        %v866 = vsel %vm533, %v865, %v864
        %v867 = vrot.slane %v761, 1
        %v868 = vsel %vm536, %v867, %v866
        %v869 = vsel %vm539, %v762, %v868
        %v870 = vrot.slane %v763, 7
        %v871 = vsel %vm542, %v870, %v869
        %v872 = vrot.slane %v764, 6
        %v873 = vsel %vm545, %v872, %v871
        %v874 = vrot.slane %v765, 5
        %v875 = vsel %vm548, %v874, %v873
        %v876 = vrot.slane %v766, 4
        %v877 = vsel %vm551, %v876, %v875
        %v879 = vmul.f32 %v859, %v877
        %v880 = vmul.f32 %v863, %v877
        %v881 = vadd.f32 %v854, %v879
        %v882 = vadd.f32 %v855, %v880
        %v883 = vlaneseq
        %v884 = vshrl.u32 %v883, 7
        %v885 = vsub.s32 4, %v884
        %v886 = vrot.slane %v749, %v885
        %v887 = vlaneseq
        %v888 = vshrl.u32 %v887, 7
        %v889 = vsub.s32 4, %v888
        %v890 = vrot.slane %v750, %v889
        %v891 = vrot.slane %v759, 4
        %v892 = vrot.slane %v760, 3
        %v893 = vsel %vm533, %v892, %v891
        %v894 = vrot.slane %v761, 2
        %v895 = vsel %vm536, %v894, %v893
        %v896 = vrot.slane %v762, 1
        %v897 = vsel %vm539, %v896, %v895
        %v898 = vsel %vm542, %v763, %v897
        %v899 = vrot.slane %v764, 7
        %v900 = vsel %vm545, %v899, %v898
        %v901 = vrot.slane %v765, 6
        %v902 = vsel %vm548, %v901, %v900
        %v903 = vrot.slane %v766, 5
        %v904 = vsel %vm551, %v903, %v902
        %v906 = vmul.f32 %v886, %v904
        %v907 = vmul.f32 %v890, %v904
        %v908 = vadd.f32 %v881, %v906
        %v909 = vadd.f32 %v882, %v907
        %v910 = vlaneseq
        %v911 = vshrl.u32 %v910, 7
        %v912 = vsub.s32 5, %v911
        %v913 = vrot.slane %v749, %v912
        %v914 = vlaneseq
        %v915 = vshrl.u32 %v914, 7
        %v916 = vsub.s32 5, %v915
        %v917 = vrot.slane %v750, %v916
        %v918 = vrot.slane %v759, 5
        %v919 = vrot.slane %v760, 4
        %v920 = vsel %vm533, %v919, %v918
        %v921 = vrot.slane %v761, 3
        %v922 = vsel %vm536, %v921, %v920
        %v923 = vrot.slane %v762, 2
        %v924 = vsel %vm539, %v923, %v922
        %v925 = vrot.slane %v763, 1
        %v926 = vsel %vm542, %v925, %v924
        %v927 = vsel %vm545, %v764, %v926
        %v928 = vrot.slane %v765, 7
        %v929 = vsel %vm548, %v928, %v927
        %v930 = vrot.slane %v766, 6
        %v931 = vsel %vm551, %v930, %v929
        %v933 = vmul.f32 %v913, %v931
        %v934 = vmul.f32 %v917, %v931
        %v935 = vadd.f32 %v908, %v933
        %v936 = vadd.f32 %v909, %v934
        %v937 = vlaneseq
        %v938 = vshrl.u32 %v937, 7
        %v939 = vsub.s32 6, %v938
        %v940 = vrot.slane %v749, %v939
        %v941 = vlaneseq
        %v942 = vshrl.u32 %v941, 7
        %v943 = vsub.s32 6, %v942
        %v944 = vrot.slane %v750, %v943
        %v945 = vrot.slane %v759, 6
        %v946 = vrot.slane %v760, 5
        %v947 = vsel %vm533, %v946, %v945
        %v948 = vrot.slane %v761, 4
        %v949 = vsel %vm536, %v948, %v947
        %v950 = vrot.slane %v762, 3
        %v951 = vsel %vm539, %v950, %v949
        %v952 = vrot.slane %v763, 2
        %v953 = vsel %vm542, %v952, %v951
        %v954 = vrot.slane %v764, 1
        %v955 = vsel %vm545, %v954, %v953
        %v956 = vsel %vm548, %v765, %v955
        %v957 = vrot.slane %v766, 7
        %v958 = vsel %vm551, %v957, %v956
        %v960 = vmul.f32 %v940, %v958
        %v961 = vmul.f32 %v944, %v958
        %v962 = vadd.f32 %v935, %v960
        %v963 = vadd.f32 %v936, %v961
        %v964 = vlaneseq
        %v965 = vshrl.u32 %v964, 7
        %v966 = vsub.s32 7, %v965
        %v967 = vrot.slane %v749, %v966
        %v968 = vlaneseq
        %v969 = vshrl.u32 %v968, 7
        %v970 = vsub.s32 7, %v969
        %v971 = vrot.slane %v750, %v970
        %v972 = vrot.slane %v759, 7
        %v973 = vrot.slane %v760, 6
        %v974 = vsel %vm533, %v973, %v972
        %v975 = vrot.slane %v761, 5
        %v976 = vsel %vm536, %v975, %v974
        %v977 = vrot.slane %v762, 4
        %v978 = vsel %vm539, %v977, %v976
        %v979 = vrot.slane %v763, 3
        %v980 = vsel %vm542, %v979, %v978
        %v981 = vrot.slane %v764, 2
        %v982 = vsel %vm545, %v981, %v980
        %v983 = vrot.slane %v765, 1
        %v984 = vsel %vm548, %v983, %v982
        %v985 = vsel %vm551, %v766, %v984
        %v987 = vmul.f32 %v967, %v985
        %v988 = vmul.f32 %v971, %v985
        %v989 = vadd.f32 %v962, %v987
        %v990 = vadd.f32 %v963, %v988
        %v991 = vld [vmem:[%s456 + $0x8] sm:$0xf]
        %v992 = vld [vmem:[%s456 + $0x1c] sm:$0xf]
        %v993 = vunpack.c.l.bf16 %v991
        %v994 = vunpack.c.l.bf16 %v992
        %v995 = vld [vmem:[%s463 + $0x8] sm:$0xf]
        %v996 = vld [vmem:[%s463 + $0x1c] sm:$0xf]
        %v997 = vld [vmem:[%s463 + $0x30] sm:$0xf]
        %v998 = vld [vmem:[%s463 + $0x44] sm:$0xf]
        %v999 = vld [vmem:[%s463 + $0x58] sm:$0xf]
        %v1000 = vld [vmem:[%s463 + $0x6c] sm:$0xf]
        %v1001 = vld [vmem:[%s463 + $0x80] sm:$0xf]
        %v1002 = vld [vmem:[%s463 + $0x94] sm:$0xf]
        %v1003 = vunpack.c.l.bf16 %v995
        %v1004 = vunpack.c.l.bf16 %v996
        %v1005 = vunpack.c.l.bf16 %v997
        %v1006 = vunpack.c.l.bf16 %v998
        %v1007 = vunpack.c.l.bf16 %v999
        %v1008 = vunpack.c.l.bf16 %v1000
        %v1009 = vunpack.c.l.bf16 %v1001
        %v1010 = vunpack.c.l.bf16 %v1002
        %v1011 = vlaneseq
        %v1012 = vshrl.u32 %v1011, 7
        %v1013 = vsub.s32 0, %v1012
        %v1014 = vrot.slane %v993, %v1013
        %v1015 = vlaneseq
        %v1016 = vshrl.u32 %v1015, 7
        %v1017 = vsub.s32 0, %v1016
        %v1018 = vrot.slane %v994, %v1017
        %v1027 = vrot.slane %v1004, 7
        %v1028 = vsel %vm533, %v1027, %v1003
        %v1029 = vrot.slane %v1005, 6
        %v1030 = vsel %vm536, %v1029, %v1028
        %v1031 = vrot.slane %v1006, 5
        %v1032 = vsel %vm539, %v1031, %v1030
        %v1033 = vrot.slane %v1007, 4
        %v1034 = vsel %vm542, %v1033, %v1032
        %v1035 = vrot.slane %v1008, 3
        %v1036 = vsel %vm545, %v1035, %v1034
        %v1037 = vrot.slane %v1009, 2
        %v1038 = vsel %vm548, %v1037, %v1036
        %v1039 = vrot.slane %v1010, 1
        %v1040 = vsel %vm551, %v1039, %v1038
        %v1042 = vmul.f32 %v1014, %v1040
        %v1043 = vmul.f32 %v1018, %v1040
        %v1044 = vadd.f32 %v989, %v1042
        %v1045 = vadd.f32 %v990, %v1043
        %v1046 = vlaneseq
        %v1047 = vshrl.u32 %v1046, 7
        %v1048 = vsub.s32 1, %v1047
        %v1049 = vrot.slane %v993, %v1048
        %v1050 = vlaneseq
        %v1051 = vshrl.u32 %v1050, 7
        %v1052 = vsub.s32 1, %v1051
        %v1053 = vrot.slane %v994, %v1052
        %v1054 = vrot.slane %v1003, 1
        %v1055 = vsel %vm533, %v1004, %v1054
        %v1056 = vrot.slane %v1005, 7
        %v1057 = vsel %vm536, %v1056, %v1055
        %v1058 = vrot.slane %v1006, 6
        %v1059 = vsel %vm539, %v1058, %v1057
        %v1060 = vrot.slane %v1007, 5
        %v1061 = vsel %vm542, %v1060, %v1059
        %v1062 = vrot.slane %v1008, 4
        %v1063 = vsel %vm545, %v1062, %v1061
        %v1064 = vrot.slane %v1009, 3
        %v1065 = vsel %vm548, %v1064, %v1063
        %v1066 = vrot.slane %v1010, 2
        %v1067 = vsel %vm551, %v1066, %v1065
        %v1069 = vmul.f32 %v1049, %v1067
        %v1070 = vmul.f32 %v1053, %v1067
        %v1071 = vadd.f32 %v1044, %v1069
        %v1072 = vadd.f32 %v1045, %v1070
        %v1073 = vlaneseq
        %v1074 = vshrl.u32 %v1073, 7
        %v1075 = vsub.s32 2, %v1074
        %v1076 = vrot.slane %v993, %v1075
        %v1077 = vlaneseq
        %v1078 = vshrl.u32 %v1077, 7
        %v1079 = vsub.s32 2, %v1078
        %v1080 = vrot.slane %v994, %v1079
        %v1081 = vrot.slane %v1003, 2
        %v1082 = vrot.slane %v1004, 1
        %v1083 = vsel %vm533, %v1082, %v1081
        %v1084 = vsel %vm536, %v1005, %v1083
        %v1085 = vrot.slane %v1006, 7
        %v1086 = vsel %vm539, %v1085, %v1084
        %v1087 = vrot.slane %v1007, 6
        %v1088 = vsel %vm542, %v1087, %v1086
        %v1089 = vrot.slane %v1008, 5
        %v1090 = vsel %vm545, %v1089, %v1088
        %v1091 = vrot.slane %v1009, 4
        %v1092 = vsel %vm548, %v1091, %v1090
        %v1093 = vrot.slane %v1010, 3
        %v1094 = vsel %vm551, %v1093, %v1092
        %v1096 = vmul.f32 %v1076, %v1094
        %v1097 = vmul.f32 %v1080, %v1094
        %v1098 = vadd.f32 %v1071, %v1096
        %v1099 = vadd.f32 %v1072, %v1097
        %v1100 = vlaneseq
        %v1101 = vshrl.u32 %v1100, 7
        %v1102 = vsub.s32 3, %v1101
        %v1103 = vrot.slane %v993, %v1102
        %v1104 = vlaneseq
        %v1105 = vshrl.u32 %v1104, 7
        %v1106 = vsub.s32 3, %v1105
        %v1107 = vrot.slane %v994, %v1106
        %v1108 = vrot.slane %v1003, 3
        %v1109 = vrot.slane %v1004, 2
        %v1110 = vsel %vm533, %v1109, %v1108
        %v1111 = vrot.slane %v1005, 1
        %v1112 = vsel %vm536, %v1111, %v1110
        %v1113 = vsel %vm539, %v1006, %v1112
        %v1114 = vrot.slane %v1007, 7
        %v1115 = vsel %vm542, %v1114, %v1113
        %v1116 = vrot.slane %v1008, 6
        %v1117 = vsel %vm545, %v1116, %v1115
        %v1118 = vrot.slane %v1009, 5
        %v1119 = vsel %vm548, %v1118, %v1117
        %v1120 = vrot.slane %v1010, 4
        %v1121 = vsel %vm551, %v1120, %v1119
        %v1123 = vmul.f32 %v1103, %v1121
        %v1124 = vmul.f32 %v1107, %v1121
        %v1125 = vadd.f32 %v1098, %v1123
        %v1126 = vadd.f32 %v1099, %v1124
        %v1127 = vlaneseq
        %v1128 = vshrl.u32 %v1127, 7
        %v1129 = vsub.s32 4, %v1128
        %v1130 = vrot.slane %v993, %v1129
        %v1131 = vlaneseq
        %v1132 = vshrl.u32 %v1131, 7
        %v1133 = vsub.s32 4, %v1132
        %v1134 = vrot.slane %v994, %v1133
        %v1135 = vrot.slane %v1003, 4
        %v1136 = vrot.slane %v1004, 3
        %v1137 = vsel %vm533, %v1136, %v1135
        %v1138 = vrot.slane %v1005, 2
        %v1139 = vsel %vm536, %v1138, %v1137
        %v1140 = vrot.slane %v1006, 1
        %v1141 = vsel %vm539, %v1140, %v1139
        %v1142 = vsel %vm542, %v1007, %v1141
        %v1143 = vrot.slane %v1008, 7
        %v1144 = vsel %vm545, %v1143, %v1142
        %v1145 = vrot.slane %v1009, 6
        %v1146 = vsel %vm548, %v1145, %v1144
        %v1147 = vrot.slane %v1010, 5
        %v1148 = vsel %vm551, %v1147, %v1146
        %v1150 = vmul.f32 %v1130, %v1148
        %v1151 = vmul.f32 %v1134, %v1148
        %v1152 = vadd.f32 %v1125, %v1150
        %v1153 = vadd.f32 %v1126, %v1151
        %v1154 = vlaneseq
        %v1155 = vshrl.u32 %v1154, 7
        %v1156 = vsub.s32 5, %v1155
        %v1157 = vrot.slane %v993, %v1156
        %v1158 = vlaneseq
        %v1159 = vshrl.u32 %v1158, 7
        %v1160 = vsub.s32 5, %v1159
        %v1161 = vrot.slane %v994, %v1160
        %v1162 = vrot.slane %v1003, 5
        %v1163 = vrot.slane %v1004, 4
        %v1164 = vsel %vm533, %v1163, %v1162
        %v1165 = vrot.slane %v1005, 3
        %v1166 = vsel %vm536, %v1165, %v1164
        %v1167 = vrot.slane %v1006, 2
        %v1168 = vsel %vm539, %v1167, %v1166
        %v1169 = vrot.slane %v1007, 1
        %v1170 = vsel %vm542, %v1169, %v1168
        %v1171 = vsel %vm545, %v1008, %v1170
        %v1172 = vrot.slane %v1009, 7
        %v1173 = vsel %vm548, %v1172, %v1171
        %v1174 = vrot.slane %v1010, 6
        %v1175 = vsel %vm551, %v1174, %v1173
        %v1177 = vmul.f32 %v1157, %v1175
        %v1178 = vmul.f32 %v1161, %v1175
        %v1179 = vadd.f32 %v1152, %v1177
        %v1180 = vadd.f32 %v1153, %v1178
        %v1181 = vlaneseq
        %v1182 = vshrl.u32 %v1181, 7
        %v1183 = vsub.s32 6, %v1182
        %v1184 = vrot.slane %v993, %v1183
        %v1185 = vlaneseq
        %v1186 = vshrl.u32 %v1185, 7
        %v1187 = vsub.s32 6, %v1186
        %v1188 = vrot.slane %v994, %v1187
        %v1189 = vrot.slane %v1003, 6
        %v1190 = vrot.slane %v1004, 5
        %v1191 = vsel %vm533, %v1190, %v1189
        %v1192 = vrot.slane %v1005, 4
        %v1193 = vsel %vm536, %v1192, %v1191
        %v1194 = vrot.slane %v1006, 3
        %v1195 = vsel %vm539, %v1194, %v1193
        %v1196 = vrot.slane %v1007, 2
        %v1197 = vsel %vm542, %v1196, %v1195
        %v1198 = vrot.slane %v1008, 1
        %v1199 = vsel %vm545, %v1198, %v1197
        %v1200 = vsel %vm548, %v1009, %v1199
        %v1201 = vrot.slane %v1010, 7
        %v1202 = vsel %vm551, %v1201, %v1200
        %v1204 = vmul.f32 %v1184, %v1202
        %v1205 = vmul.f32 %v1188, %v1202
        %v1206 = vadd.f32 %v1179, %v1204
        %v1207 = vadd.f32 %v1180, %v1205
        %v1208 = vlaneseq
        %v1209 = vshrl.u32 %v1208, 7
        %v1210 = vsub.s32 7, %v1209
        %v1211 = vrot.slane %v993, %v1210
        %v1212 = vlaneseq
        %v1213 = vshrl.u32 %v1212, 7
        %v1214 = vsub.s32 7, %v1213
        %v1215 = vrot.slane %v994, %v1214
        %v1216 = vrot.slane %v1003, 7
        %v1217 = vrot.slane %v1004, 6
        %v1218 = vsel %vm533, %v1217, %v1216
        %v1219 = vrot.slane %v1005, 5
        %v1220 = vsel %vm536, %v1219, %v1218
        %v1221 = vrot.slane %v1006, 4
        %v1222 = vsel %vm539, %v1221, %v1220
        %v1223 = vrot.slane %v1007, 3
        %v1224 = vsel %vm542, %v1223, %v1222
        %v1225 = vrot.slane %v1008, 2
        %v1226 = vsel %vm545, %v1225, %v1224
        %v1227 = vrot.slane %v1009, 1
        %v1228 = vsel %vm548, %v1227, %v1226
        %v1229 = vsel %vm551, %v1010, %v1228
        %v1231 = vmul.f32 %v1211, %v1229
        %v1232 = vmul.f32 %v1215, %v1229
        %v1233 = vadd.f32 %v1206, %v1231
        %v1234 = vadd.f32 %v1207, %v1232
        %v1235 = vld [vmem:[%s456 + $0xc] sm:$0xf]
        %v1236 = vld [vmem:[%s456 + $0x20] sm:$0xf]
        %v1237 = vunpack.c.l.bf16 %v1235
        %v1238 = vunpack.c.l.bf16 %v1236
        %v1239 = vld [vmem:[%s463 + $0xc] sm:$0xf]
        %v1240 = vld [vmem:[%s463 + $0x20] sm:$0xf]
        %v1241 = vld [vmem:[%s463 + $0x34] sm:$0xf]
        %v1242 = vld [vmem:[%s463 + $0x48] sm:$0xf]
        %v1243 = vld [vmem:[%s463 + $0x5c] sm:$0xf]
        %v1244 = vld [vmem:[%s463 + $0x70] sm:$0xf]
        %v1245 = vld [vmem:[%s463 + $0x84] sm:$0xf]
        %v1246 = vld [vmem:[%s463 + $0x98] sm:$0xf]
        %v1247 = vunpack.c.l.bf16 %v1239
        %v1248 = vunpack.c.l.bf16 %v1240
        %v1249 = vunpack.c.l.bf16 %v1241
        %v1250 = vunpack.c.l.bf16 %v1242
        %v1251 = vunpack.c.l.bf16 %v1243
        %v1252 = vunpack.c.l.bf16 %v1244
        %v1253 = vunpack.c.l.bf16 %v1245
        %v1254 = vunpack.c.l.bf16 %v1246
        %v1255 = vlaneseq
        %v1256 = vshrl.u32 %v1255, 7
        %v1257 = vsub.s32 0, %v1256
        %v1258 = vrot.slane %v1237, %v1257
        %v1259 = vlaneseq
        %v1260 = vshrl.u32 %v1259, 7
        %v1261 = vsub.s32 0, %v1260
        %v1262 = vrot.slane %v1238, %v1261
        %v1271 = vrot.slane %v1248, 7
        %v1272 = vsel %vm533, %v1271, %v1247
        %v1273 = vrot.slane %v1249, 6
        %v1274 = vsel %vm536, %v1273, %v1272
        %v1275 = vrot.slane %v1250, 5
        %v1276 = vsel %vm539, %v1275, %v1274
        %v1277 = vrot.slane %v1251, 4
        %v1278 = vsel %vm542, %v1277, %v1276
        %v1279 = vrot.slane %v1252, 3
        %v1280 = vsel %vm545, %v1279, %v1278
        %v1281 = vrot.slane %v1253, 2
        %v1282 = vsel %vm548, %v1281, %v1280
        %v1283 = vrot.slane %v1254, 1
        %v1284 = vsel %vm551, %v1283, %v1282
        %v1286 = vmul.f32 %v1258, %v1284
        %v1287 = vmul.f32 %v1262, %v1284
        %v1288 = vadd.f32 %v1233, %v1286
        %v1289 = vadd.f32 %v1234, %v1287
        %v1290 = vlaneseq
        %v1291 = vshrl.u32 %v1290, 7
        %v1292 = vsub.s32 1, %v1291
        %v1293 = vrot.slane %v1237, %v1292
        %v1294 = vlaneseq
        %v1295 = vshrl.u32 %v1294, 7
        %v1296 = vsub.s32 1, %v1295
        %v1297 = vrot.slane %v1238, %v1296
        %v1298 = vrot.slane %v1247, 1
        %v1299 = vsel %vm533, %v1248, %v1298
        %v1300 = vrot.slane %v1249, 7
        %v1301 = vsel %vm536, %v1300, %v1299
        %v1302 = vrot.slane %v1250, 6
        %v1303 = vsel %vm539, %v1302, %v1301
        %v1304 = vrot.slane %v1251, 5
        %v1305 = vsel %vm542, %v1304, %v1303
        %v1306 = vrot.slane %v1252, 4
        %v1307 = vsel %vm545, %v1306, %v1305
        %v1308 = vrot.slane %v1253, 3
        %v1309 = vsel %vm548, %v1308, %v1307
        %v1310 = vrot.slane %v1254, 2
        %v1311 = vsel %vm551, %v1310, %v1309
        %v1313 = vmul.f32 %v1293, %v1311
        %v1314 = vmul.f32 %v1297, %v1311
        %v1315 = vadd.f32 %v1288, %v1313
        %v1316 = vadd.f32 %v1289, %v1314
        %v1317 = vlaneseq
        %v1318 = vshrl.u32 %v1317, 7
        %v1319 = vsub.s32 2, %v1318
        %v1320 = vrot.slane %v1237, %v1319
        %v1321 = vlaneseq
        %v1322 = vshrl.u32 %v1321, 7
        %v1323 = vsub.s32 2, %v1322
        %v1324 = vrot.slane %v1238, %v1323
        %v1325 = vrot.slane %v1247, 2
        %v1326 = vrot.slane %v1248, 1
        %v1327 = vsel %vm533, %v1326, %v1325
        %v1328 = vsel %vm536, %v1249, %v1327
        %v1329 = vrot.slane %v1250, 7
        %v1330 = vsel %vm539, %v1329, %v1328
        %v1331 = vrot.slane %v1251, 6
        %v1332 = vsel %vm542, %v1331, %v1330
        %v1333 = vrot.slane %v1252, 5
        %v1334 = vsel %vm545, %v1333, %v1332
        %v1335 = vrot.slane %v1253, 4
        %v1336 = vsel %vm548, %v1335, %v1334
        %v1337 = vrot.slane %v1254, 3
        %v1338 = vsel %vm551, %v1337, %v1336
        %v1340 = vmul.f32 %v1320, %v1338
        %v1341 = vmul.f32 %v1324, %v1338
        %v1342 = vadd.f32 %v1315, %v1340
        %v1343 = vadd.f32 %v1316, %v1341
        %v1344 = vlaneseq
        %v1345 = vshrl.u32 %v1344, 7
        %v1346 = vsub.s32 3, %v1345
        %v1347 = vrot.slane %v1237, %v1346
        %v1348 = vlaneseq
        %v1349 = vshrl.u32 %v1348, 7
        %v1350 = vsub.s32 3, %v1349
        %v1351 = vrot.slane %v1238, %v1350
        %v1352 = vrot.slane %v1247, 3
        %v1353 = vrot.slane %v1248, 2
        %v1354 = vsel %vm533, %v1353, %v1352
        %v1355 = vrot.slane %v1249, 1
        %v1356 = vsel %vm536, %v1355, %v1354
        %v1357 = vsel %vm539, %v1250, %v1356
        %v1358 = vrot.slane %v1251, 7
        %v1359 = vsel %vm542, %v1358, %v1357
        %v1360 = vrot.slane %v1252, 6
        %v1361 = vsel %vm545, %v1360, %v1359
        %v1362 = vrot.slane %v1253, 5
        %v1363 = vsel %vm548, %v1362, %v1361
        %v1364 = vrot.slane %v1254, 4
        %v1365 = vsel %vm551, %v1364, %v1363
        %v1367 = vmul.f32 %v1347, %v1365
        %v1368 = vmul.f32 %v1351, %v1365
        %v1369 = vadd.f32 %v1342, %v1367
        %v1370 = vadd.f32 %v1343, %v1368
        %v1371 = vlaneseq
        %v1372 = vshrl.u32 %v1371, 7
        %v1373 = vsub.s32 4, %v1372
        %v1374 = vrot.slane %v1237, %v1373
        %v1375 = vlaneseq
        %v1376 = vshrl.u32 %v1375, 7
        %v1377 = vsub.s32 4, %v1376
        %v1378 = vrot.slane %v1238, %v1377
        %v1379 = vrot.slane %v1247, 4
        %v1380 = vrot.slane %v1248, 3
        %v1381 = vsel %vm533, %v1380, %v1379
        %v1382 = vrot.slane %v1249, 2
        %v1383 = vsel %vm536, %v1382, %v1381
        %v1384 = vrot.slane %v1250, 1
        %v1385 = vsel %vm539, %v1384, %v1383
        %v1386 = vsel %vm542, %v1251, %v1385
        %v1387 = vrot.slane %v1252, 7
        %v1388 = vsel %vm545, %v1387, %v1386
        %v1389 = vrot.slane %v1253, 6
        %v1390 = vsel %vm548, %v1389, %v1388
        %v1391 = vrot.slane %v1254, 5
        %v1392 = vsel %vm551, %v1391, %v1390
        %v1394 = vmul.f32 %v1374, %v1392
        %v1395 = vmul.f32 %v1378, %v1392
        %v1396 = vadd.f32 %v1369, %v1394
        %v1397 = vadd.f32 %v1370, %v1395
        %v1398 = vlaneseq
        %v1399 = vshrl.u32 %v1398, 7
        %v1400 = vsub.s32 5, %v1399
        %v1401 = vrot.slane %v1237, %v1400
        %v1402 = vlaneseq
        %v1403 = vshrl.u32 %v1402, 7
        %v1404 = vsub.s32 5, %v1403
        %v1405 = vrot.slane %v1238, %v1404
        %v1406 = vrot.slane %v1247, 5
        %v1407 = vrot.slane %v1248, 4
        %v1408 = vsel %vm533, %v1407, %v1406
        %v1409 = vrot.slane %v1249, 3
        %v1410 = vsel %vm536, %v1409, %v1408
        %v1411 = vrot.slane %v1250, 2
        %v1412 = vsel %vm539, %v1411, %v1410
        %v1413 = vrot.slane %v1251, 1
        %v1414 = vsel %vm542, %v1413, %v1412
        %v1415 = vsel %vm545, %v1252, %v1414
        %v1416 = vrot.slane %v1253, 7
        %v1417 = vsel %vm548, %v1416, %v1415
        %v1418 = vrot.slane %v1254, 6
        %v1419 = vsel %vm551, %v1418, %v1417
        %v1421 = vmul.f32 %v1401, %v1419
        %v1422 = vmul.f32 %v1405, %v1419
        %v1423 = vadd.f32 %v1396, %v1421
        %v1424 = vadd.f32 %v1397, %v1422
        %v1425 = vlaneseq
        %v1426 = vshrl.u32 %v1425, 7
        %v1427 = vsub.s32 6, %v1426
        %v1428 = vrot.slane %v1237, %v1427
        %v1429 = vlaneseq
        %v1430 = vshrl.u32 %v1429, 7
        %v1431 = vsub.s32 6, %v1430
        %v1432 = vrot.slane %v1238, %v1431
        %v1433 = vrot.slane %v1247, 6
        %v1434 = vrot.slane %v1248, 5
        %v1435 = vsel %vm533, %v1434, %v1433
        %v1436 = vrot.slane %v1249, 4
        %v1437 = vsel %vm536, %v1436, %v1435
        %v1438 = vrot.slane %v1250, 3
        %v1439 = vsel %vm539, %v1438, %v1437
        %v1440 = vrot.slane %v1251, 2
        %v1441 = vsel %vm542, %v1440, %v1439
        %v1442 = vrot.slane %v1252, 1
        %v1443 = vsel %vm545, %v1442, %v1441
        %v1444 = vsel %vm548, %v1253, %v1443
        %v1445 = vrot.slane %v1254, 7
        %v1446 = vsel %vm551, %v1445, %v1444
        %v1448 = vmul.f32 %v1428, %v1446
        %v1449 = vmul.f32 %v1432, %v1446
        %v1450 = vadd.f32 %v1423, %v1448
        %v1451 = vadd.f32 %v1424, %v1449
        %v1452 = vlaneseq
        %v1453 = vshrl.u32 %v1452, 7
        %v1454 = vsub.s32 7, %v1453
        %v1455 = vrot.slane %v1237, %v1454
        %v1456 = vlaneseq
        %v1457 = vshrl.u32 %v1456, 7
        %v1458 = vsub.s32 7, %v1457
        %v1459 = vrot.slane %v1238, %v1458
        %v1460 = vrot.slane %v1247, 7
        %v1461 = vrot.slane %v1248, 6
        %v1462 = vsel %vm533, %v1461, %v1460
        %v1463 = vrot.slane %v1249, 5
        %v1464 = vsel %vm536, %v1463, %v1462
        %v1465 = vrot.slane %v1250, 4
        %v1466 = vsel %vm539, %v1465, %v1464
        %v1467 = vrot.slane %v1251, 3
        %v1468 = vsel %vm542, %v1467, %v1466
        %v1469 = vrot.slane %v1252, 2
        %v1470 = vsel %vm545, %v1469, %v1468
        %v1471 = vrot.slane %v1253, 1
        %v1472 = vsel %vm548, %v1471, %v1470
        %v1473 = vsel %vm551, %v1254, %v1472
        %v1475 = vmul.f32 %v1455, %v1473
        %v1476 = vmul.f32 %v1459, %v1473
        %v1477 = vadd.f32 %v1450, %v1475
        %v1478 = vadd.f32 %v1451, %v1476
        %v1479 = vld [vmem:[%s456 + $0x10] sm:$0xf]
        %v1480 = vld [vmem:[%s456 + $0x24] sm:$0xf]
        %v1481 = vunpack.c.l.bf16 %v1479
        %v1482 = vunpack.c.l.bf16 %v1480
        %v1483 = vld [vmem:[%s463 + $0x10] sm:$0xf]
        %v1484 = vld [vmem:[%s463 + $0x24] sm:$0xf]
        %v1485 = vld [vmem:[%s463 + $0x38] sm:$0xf]
        %v1486 = vld [vmem:[%s463 + $0x4c] sm:$0xf]
        %v1487 = vld [vmem:[%s463 + $0x60] sm:$0xf]
        %v1488 = vld [vmem:[%s463 + $0x74] sm:$0xf]
        %v1489 = vld [vmem:[%s463 + $0x88] sm:$0xf]
        %v1490 = vld [vmem:[%s463 + $0x9c] sm:$0xf]
        %v1491 = vunpack.c.l.bf16 %v1483
        %v1492 = vunpack.c.l.bf16 %v1484
        %v1493 = vunpack.c.l.bf16 %v1485
        %v1494 = vunpack.c.l.bf16 %v1486
        %v1495 = vunpack.c.l.bf16 %v1487
        %v1496 = vunpack.c.l.bf16 %v1488
        %v1497 = vunpack.c.l.bf16 %v1489
        %v1498 = vunpack.c.l.bf16 %v1490
        %v1499 = vlaneseq
        %v1500 = vshrl.u32 %v1499, 7
        %v1501 = vsub.s32 0, %v1500
        %v1502 = vrot.slane %v1481, %v1501
        %v1503 = vlaneseq
        %v1504 = vshrl.u32 %v1503, 7
        %v1505 = vsub.s32 0, %v1504
        %v1506 = vrot.slane %v1482, %v1505
        %v1515 = vrot.slane %v1492, 7
        %v1516 = vsel %vm533, %v1515, %v1491
        %v1517 = vrot.slane %v1493, 6
        %v1518 = vsel %vm536, %v1517, %v1516
        %v1519 = vrot.slane %v1494, 5
        %v1520 = vsel %vm539, %v1519, %v1518
        %v1521 = vrot.slane %v1495, 4
        %v1522 = vsel %vm542, %v1521, %v1520
        %v1523 = vrot.slane %v1496, 3
        %v1524 = vsel %vm545, %v1523, %v1522
        %v1525 = vrot.slane %v1497, 2
        %v1526 = vsel %vm548, %v1525, %v1524
        %v1527 = vrot.slane %v1498, 1
        %v1528 = vsel %vm551, %v1527, %v1526
        %v1530 = vmul.f32 %v1502, %v1528
        %v1531 = vmul.f32 %v1506, %v1528
        %v1532 = vadd.f32 %v1477, %v1530
        %v1533 = vadd.f32 %v1478, %v1531
        %v1534 = vlaneseq
        %v1535 = vshrl.u32 %v1534, 7
        %v1536 = vsub.s32 1, %v1535
        %v1537 = vrot.slane %v1481, %v1536
        %v1538 = vlaneseq
        %v1539 = vshrl.u32 %v1538, 7
        %v1540 = vsub.s32 1, %v1539
        %v1541 = vrot.slane %v1482, %v1540
        %v1542 = vrot.slane %v1491, 1
        %v1543 = vsel %vm533, %v1492, %v1542
        %v1544 = vrot.slane %v1493, 7
        %v1545 = vsel %vm536, %v1544, %v1543
        %v1546 = vrot.slane %v1494, 6
        %v1547 = vsel %vm539, %v1546, %v1545
        %v1548 = vrot.slane %v1495, 5
        %v1549 = vsel %vm542, %v1548, %v1547
        %v1550 = vrot.slane %v1496, 4
        %v1551 = vsel %vm545, %v1550, %v1549
        %v1552 = vrot.slane %v1497, 3
        %v1553 = vsel %vm548, %v1552, %v1551
        %v1554 = vrot.slane %v1498, 2
        %v1555 = vsel %vm551, %v1554, %v1553
        %v1557 = vmul.f32 %v1537, %v1555
        %v1558 = vmul.f32 %v1541, %v1555
        %v1559 = vadd.f32 %v1532, %v1557
        %v1560 = vadd.f32 %v1533, %v1558
        %v1561 = vlaneseq
        %v1562 = vshrl.u32 %v1561, 7
        %v1563 = vsub.s32 2, %v1562
        %v1564 = vrot.slane %v1481, %v1563
        %v1565 = vlaneseq
        %v1566 = vshrl.u32 %v1565, 7
        %v1567 = vsub.s32 2, %v1566
        %v1568 = vrot.slane %v1482, %v1567
        %v1569 = vrot.slane %v1491, 2
        %v1570 = vrot.slane %v1492, 1
        %v1571 = vsel %vm533, %v1570, %v1569
        %v1572 = vsel %vm536, %v1493, %v1571
        %v1573 = vrot.slane %v1494, 7
        %v1574 = vsel %vm539, %v1573, %v1572
        %v1575 = vrot.slane %v1495, 6
        %v1576 = vsel %vm542, %v1575, %v1574
        %v1577 = vrot.slane %v1496, 5
        %v1578 = vsel %vm545, %v1577, %v1576
        %v1579 = vrot.slane %v1497, 4
        %v1580 = vsel %vm548, %v1579, %v1578
        %v1581 = vrot.slane %v1498, 3
        %v1582 = vsel %vm551, %v1581, %v1580
        %v1584 = vmul.f32 %v1564, %v1582
        %v1585 = vmul.f32 %v1568, %v1582
        %v1586 = vadd.f32 %v1559, %v1584
        %v1587 = vadd.f32 %v1560, %v1585
        %v1588 = vlaneseq
        %v1589 = vshrl.u32 %v1588, 7
        %v1590 = vsub.s32 3, %v1589
        %v1591 = vrot.slane %v1481, %v1590
        %v1592 = vlaneseq
        %v1593 = vshrl.u32 %v1592, 7
        %v1594 = vsub.s32 3, %v1593
        %v1595 = vrot.slane %v1482, %v1594
        %v1596 = vrot.slane %v1491, 3
        %v1597 = vrot.slane %v1492, 2
        %v1598 = vsel %vm533, %v1597, %v1596
        %v1599 = vrot.slane %v1493, 1
        %v1600 = vsel %vm536, %v1599, %v1598
        %v1601 = vsel %vm539, %v1494, %v1600
        %v1602 = vrot.slane %v1495, 7
        %v1603 = vsel %vm542, %v1602, %v1601
        %v1604 = vrot.slane %v1496, 6
        %v1605 = vsel %vm545, %v1604, %v1603
        %v1606 = vrot.slane %v1497, 5
        %v1607 = vsel %vm548, %v1606, %v1605
        %v1608 = vrot.slane %v1498, 4
        %v1609 = vsel %vm551, %v1608, %v1607
        %v1611 = vmul.f32 %v1591, %v1609
        %v1612 = vmul.f32 %v1595, %v1609
        %v1613 = vadd.f32 %v1586, %v1611
        %v1614 = vadd.f32 %v1587, %v1612
        %v1615 = vlaneseq
        %v1616 = vshrl.u32 %v1615, 7
        %v1617 = vsub.s32 4, %v1616
        %v1618 = vrot.slane %v1481, %v1617
        %v1619 = vlaneseq
        %v1620 = vshrl.u32 %v1619, 7
        %v1621 = vsub.s32 4, %v1620
        %v1622 = vrot.slane %v1482, %v1621
        %v1623 = vrot.slane %v1491, 4
        %v1624 = vrot.slane %v1492, 3
        %v1625 = vsel %vm533, %v1624, %v1623
        %v1626 = vrot.slane %v1493, 2
        %v1627 = vsel %vm536, %v1626, %v1625
        %v1628 = vrot.slane %v1494, 1
        %v1629 = vsel %vm539, %v1628, %v1627
        %v1630 = vsel %vm542, %v1495, %v1629
        %v1631 = vrot.slane %v1496, 7
        %v1632 = vsel %vm545, %v1631, %v1630
        %v1633 = vrot.slane %v1497, 6
        %v1634 = vsel %vm548, %v1633, %v1632
        %v1635 = vrot.slane %v1498, 5
        %v1636 = vsel %vm551, %v1635, %v1634
        %v1638 = vmul.f32 %v1618, %v1636
        %v1639 = vmul.f32 %v1622, %v1636
        %v1640 = vadd.f32 %v1613, %v1638
        %v1641 = vadd.f32 %v1614, %v1639
        %v1642 = vlaneseq
        %v1643 = vshrl.u32 %v1642, 7
        %v1644 = vsub.s32 5, %v1643
        %v1645 = vrot.slane %v1481, %v1644
        %v1646 = vlaneseq
        %v1647 = vshrl.u32 %v1646, 7
        %v1648 = vsub.s32 5, %v1647
        %v1649 = vrot.slane %v1482, %v1648
        %v1650 = vrot.slane %v1491, 5
        %v1651 = vrot.slane %v1492, 4
        %v1652 = vsel %vm533, %v1651, %v1650
        %v1653 = vrot.slane %v1493, 3
        %v1654 = vsel %vm536, %v1653, %v1652
        %v1655 = vrot.slane %v1494, 2
        %v1656 = vsel %vm539, %v1655, %v1654
        %v1657 = vrot.slane %v1495, 1
        %v1658 = vsel %vm542, %v1657, %v1656
        %v1659 = vsel %vm545, %v1496, %v1658
        %v1660 = vrot.slane %v1497, 7
        %v1661 = vsel %vm548, %v1660, %v1659
        %v1662 = vrot.slane %v1498, 6
        %v1663 = vsel %vm551, %v1662, %v1661
        %v1665 = vmul.f32 %v1645, %v1663
        %v1666 = vmul.f32 %v1649, %v1663
        %v1667 = vadd.f32 %v1640, %v1665
        %v1668 = vadd.f32 %v1641, %v1666
        %v1669 = vlaneseq
        %v1670 = vshrl.u32 %v1669, 7
        %v1671 = vsub.s32 6, %v1670
        %v1672 = vrot.slane %v1481, %v1671
        %v1673 = vlaneseq
        %v1674 = vshrl.u32 %v1673, 7
        %v1675 = vsub.s32 6, %v1674
        %v1676 = vrot.slane %v1482, %v1675
        %v1677 = vrot.slane %v1491, 6
        %v1678 = vrot.slane %v1492, 5
        %v1679 = vsel %vm533, %v1678, %v1677
        %v1680 = vrot.slane %v1493, 4
        %v1681 = vsel %vm536, %v1680, %v1679
        %v1682 = vrot.slane %v1494, 3
        %v1683 = vsel %vm539, %v1682, %v1681
        %v1684 = vrot.slane %v1495, 2
        %v1685 = vsel %vm542, %v1684, %v1683
        %v1686 = vrot.slane %v1496, 1
        %v1687 = vsel %vm545, %v1686, %v1685
        %v1688 = vsel %vm548, %v1497, %v1687
        %v1689 = vrot.slane %v1498, 7
        %v1690 = vsel %vm551, %v1689, %v1688
        %v1692 = vmul.f32 %v1672, %v1690
        %v1693 = vmul.f32 %v1676, %v1690
        %v1694 = vadd.f32 %v1667, %v1692
        %v1695 = vadd.f32 %v1668, %v1693
        %v1696 = vlaneseq
        %v1697 = vshrl.u32 %v1696, 7
        %v1698 = vsub.s32 7, %v1697
        %v1699 = vrot.slane %v1481, %v1698
        %v1700 = vlaneseq
        %v1701 = vshrl.u32 %v1700, 7
        %v1702 = vsub.s32 7, %v1701
        %v1703 = vrot.slane %v1482, %v1702
        %v1704 = vrot.slane %v1491, 7
        %v1705 = vrot.slane %v1492, 6
        %v1706 = vsel %vm533, %v1705, %v1704
        %v1707 = vrot.slane %v1493, 5
        %v1708 = vsel %vm536, %v1707, %v1706
        %v1709 = vrot.slane %v1494, 4
        %v1710 = vsel %vm539, %v1709, %v1708
        %v1711 = vrot.slane %v1495, 3
        %v1712 = vsel %vm542, %v1711, %v1710
        %v1713 = vrot.slane %v1496, 2
        %v1714 = vsel %vm545, %v1713, %v1712
        %v1715 = vrot.slane %v1497, 1
        %v1716 = vsel %vm548, %v1715, %v1714
        %v1717 = vsel %vm551, %v1498, %v1716
        %v1719 = vmul.f32 %v1699, %v1717
        %v1720 = vmul.f32 %v1703, %v1717
        %v1721 = vadd.f32 %v1694, %v1719
        %v1722 = vadd.f32 %v1695, %v1720
        %v1723 = vld [vmem:[%s495] sm:$0xff]
        %1725 = vset.pattern.permute.xlu0 0
        %1726 = vperm.xlu0 %1725, %v1723
        %v1727 = vpop.permute.xlu0 %1726
        %v1729 = vadd.f32 %v1721, %v1727
        %v1730 = vadd.f32 %v1722, %v1727
        %1731 = vst [vmem:[%s490] sm:$0xff] %v1729
        %1732 = vst [vmem:[%s490 + $0x8] sm:$0xff] %v1730
        %s1733 = sand.u32 %s116, 1
        %s1734 = sand.u32 %s116, 1
        %s1735 = smul.addr %s1734, 16
        %s1736 = scalar_lea.vmem [#allocation4], %s1735
        // Predicated region
        $region115: #{conv_local_2d.1} parent=105 // pred_check
          %p1737 = pneg %p126
        $region116: #{conv_local_2d.1} parent=105 // pred_check_branch
          %1739 = sbr.rel (%p1737) target = $region118
        $region117: #{conv_local_2d.1} parent=105 // pred_region
          %s1740 = smul.addr %s19, 2
          %s1741 = sadd.s32 %s18, %s1740
          %s1742 = smul.addr %s1741, 8
          %s1743 = scalar_lea.vmem %s3, %s1742
          // Predicated region
          $region119: #{conv_local_2d.1} parent=117 // pred_check
            _
          $region120: #{conv_local_2d.1} parent=117 // pred_check_branch
            %1745 = sbr.rel (0) target = $region122
          $region121: #{conv_local_2d.1} parent=117 // pred_region
            // Predicated region
            $region123: #{conv_local_2d.1} parent=121 // pred_check
              _
            $region124: #{conv_local_2d.1} parent=121 // pred_check_branch
              %1747 = sbr.rel (0) target = $region126
            $region125: #{conv_local_2d.1} parent=121 // pred_region
              // Predicated region
              $region138: #{conv_local_2d.1} parent=125 // pred_check
                _
              $region139: #{conv_local_2d.1} parent=125 // pred_check_branch
                %1764 = sbr.rel (0) target = $region141
              $region140: #{conv_local_2d.1} parent=125 // pred_region
                loop: start=0, step=1, limit=1
                $region142: #{conv_local_2d.1} parent=140 // loop_pre_header
                  _
                $region143: #{conv_local_2d.1} parent=140 // loop_header
                  %s1766 = sphi 0, %s1770
                  %p1767 = scmp.ge.s32.totalorder %s1766, 1
                  %s1771 = sphi %s1736, %s1736
                  %s1772 = sphi %s1743, %s1743
                $region144: #{conv_local_2d.1} parent=140 // loop_header_branch
                  %1769 = sbr.rel (%p1767) target = $region148
                $region145: #{conv_local_2d.1} parent=140 // loop_body
                  %v1773 = vld [vmem:[%s1771] sm:$0xff]
                  %1774 = vst [vmem:[%s1772] sm:$0xff] %v1773
                  %v1775 = vld [vmem:[%s1771 + $0x8] sm:$0xff]
                  %1776 = vst [vmem:[%s1772 + $0x10] sm:$0xff] %v1775
                $region146: #{conv_local_2d.1} parent=140 // loop_footer
                  %s1770 = sadd.s32 1, %s1766
                $region147: #{conv_local_2d.1} parent=140 // loop_footer_branch
                  %1765 = sbr.rel target = $region143
                $region148: #{conv_local_2d.1} parent=140 // loop_exit
                  _
              $region141: #{conv_local_2d.1} parent=125 // pred_fallthru
                _
              // Predicated region
              $region149: #{conv_local_2d.1} parent=125 // pred_check
                _
              $region150: #{conv_local_2d.1} parent=125 // pred_check_branch
                %1778 = sbr.rel target = $region152
              $region151: #{conv_local_2d.1} parent=125 // pred_region
                _
              $region152: #{conv_local_2d.1} parent=125 // pred_fallthru
                _
            $region126: #{conv_local_2d.1} parent=121 // pred_fallthru
              _
            // Predicated region
            $region127: #{conv_local_2d.1} parent=121 // pred_check
              _
            $region128: #{conv_local_2d.1} parent=121 // pred_check_branch
              %1749 = sbr.rel target = $region130
            $region129: #{conv_local_2d.1} parent=121 // pred_region
              loop: start=0, step=1, limit=1
              $region131: #{conv_local_2d.1} parent=129 // loop_pre_header
                _
              $region132: #{conv_local_2d.1} parent=129 // loop_header
                %s1752 = sphi 0, %s1756
                %p1753 = scmp.ge.s32.totalorder %s1752, 1
                %s1757 = sphi %s1736, %s1736
                %s1758 = sphi %s1743, %s1743
              $region133: #{conv_local_2d.1} parent=129 // loop_header_branch
                %1755 = sbr.rel (%p1753) target = $region137
              $region134: #{conv_local_2d.1} parent=129 // loop_body
                %v1759 = vld [vmem:[%s1757] sm:$0xff]
                %1760 = vst [vmem:[%s1758] sm:$0xff] %v1759
                %v1761 = vld [vmem:[%s1757 + $0x8] sm:$0xff]
                %1762 = vst [vmem:[%s1758 + $0x10] sm:$0xff] %v1761
              $region135: #{conv_local_2d.1} parent=129 // loop_footer
                %s1756 = sadd.s32 1, %s1752
              $region136: #{conv_local_2d.1} parent=129 // loop_footer_branch
                %1751 = sbr.rel target = $region132
              $region137: #{conv_local_2d.1} parent=129 // loop_exit
                _
            $region130: #{conv_local_2d.1} parent=121 // pred_fallthru
              _
          $region122: #{conv_local_2d.1} parent=117 // pred_fallthru
            _
          %1779 = vnop
        $region118: #{conv_local_2d.1} parent=105 // pred_fallthru
          _
      $region106: #{conv_local_2d.1} parent=5 // pred_fallthru
        _
      %p1780 = scmp.le.s32.totalorder 2, %s9
      // Predicated region
      $region153: #{conv_local_2d.1} parent=5 // pred_check
        %p1781 = pneg %p1780
      $region154: #{conv_local_2d.1} parent=5 // pred_check_branch
        %1783 = sbr.rel (%p1781) target = $region156
      $region155: #{conv_local_2d.1} parent=5 // pred_region
        %s1784 = ssub.s32 %s9, 2
        // Predicated region
        $region157: #{conv_local_2d.1} parent=155 // pred_check
          %p1785 = pneg %p132
        $region158: #{conv_local_2d.1} parent=155 // pred_check_branch
          %1787 = sbr.rel (%p1785) target = $region160
        $region159: #{conv_local_2d.1} parent=155 // pred_region
          %s1788 = sand.u32 %s117, 1
          %s1789 = sand.u32 %s117, 1
          %s1790 = smul.addr %s1789, 16
          %s1791 = scalar_lea.vmem [#allocation4], %s1790
        $region160: #{conv_local_2d.1} parent=155 // pred_fallthru
          _
      $region156: #{conv_local_2d.1} parent=5 // pred_fallthru
        _
    $region6: #{conv_local_2d.1} parent=1 // loop_footer
      %s13 = sadd.s32 1, %s9
    $region7: #{conv_local_2d.1} parent=1 // loop_footer_branch
      %8 = sbr.rel target = $region3
    $region8: #{conv_local_2d.1} parent=1 // loop_exit
      _

</llo_original>
